<compile_context>
chip_gen: v7x
topology: tpu7x:2x2x1
jax: 0.10.0
libtpu: 0.0.40
codegen_flags: <defaults>
</compile_context>

<pallas_src>
import functools

import jax
import jax.numpy as jnp
import numpy as np
from jax import lax
from jax.experimental import pallas as pl
from jax.experimental.pallas import tpu as pltpu


def _bilstm_kernel(x_ref, wih_ref, bih_ref, whh_f_ref, whh_b_ref,
                   wemb_ref, bemb_ref, o_ref,
                   gin_ref, hfwd_ref, hbwd_ref, *, T, B):
    """Whole bidirectional LSTM + linear embedding in one kernel invocation.

    x_ref    : (T*B, nIn)   time-major flattened input
    wih_ref  : (nIn, 8H)    [fwd gates | bwd gates] input->gate weights (i,f,g,o)
    bih_ref  : (1, 8H)      combined b_ih + b_hh for both directions
    whh_*    : (H, 4H)      hidden->gate weights (transposed)
    wemb_ref : (2H, nOut)   embedding weight; rows [0:H] fwd half, [H:2H] bwd half
    bemb_ref : (1, nOut)
    o_ref    : (T*B, nOut)  flattened output
    gin_ref  : (T*B, 8H)    scratch: input-projected gates, both directions
    hfwd_ref : (T*B, H)     scratch: forward hidden states
    hbwd_ref : (T*B, H)     scratch: backward hidden states
    """
    H = whh_f_ref.shape[0]
    G = 4 * H

    # ---- 1) batched input projection for both directions: one big MXU matmul ----
    gin_ref[...] = (
        jnp.dot(x_ref[...], wih_ref[...], preferred_element_type=jnp.float32)
        + bih_ref[...])

    # ---- 2) hoist loop-invariant weight loads out of the recurrence ----
    whh_f = whh_f_ref[...]
    whh_b = whh_b_ref[...]

    def cell(gates, c):
        i = jax.nn.sigmoid(gates[:, 0:H])
        f = jax.nn.sigmoid(gates[:, H:2 * H])
        g = jnp.tanh(gates[:, 2 * H:3 * H])
        o = jax.nn.sigmoid(gates[:, 3 * H:4 * H])
        c_new = f * c + i * g
        h_new = o * jnp.tanh(c_new)
        return h_new, c_new

    def step(t, carry):
        hf, cf, hb, cb = carry
        tb = T - 1 - t
        # Two independent dependence chains per iteration (fwd @ t, bwd @ T-1-t):
        # only h @ Whh stays on the serial critical path.
        gf = gin_ref[pl.ds(t * B, B), 0:G] + jnp.dot(
            hf, whh_f, preferred_element_type=jnp.float32)
        gb = gin_ref[pl.ds(tb * B, B), G:2 * G] + jnp.dot(
            hb, whh_b, preferred_element_type=jnp.float32)
        hf, cf = cell(gf, cf)
        hb, cb = cell(gb, cb)
        hfwd_ref[pl.ds(t * B, B), :] = hf
        hbwd_ref[pl.ds(tb * B, B), :] = hb
        return (hf, cf, hb, cb)

    zeros = jnp.zeros((B, H), jnp.float32)
    carry = (zeros, zeros, zeros, zeros)
    if T <= 32:
        # Full unroll: static slice offsets, maximal scheduler visibility.
        for t in range(T):
            carry = step(t, carry)
    else:
        lax.fori_loop(0, T, step, carry, unroll=4)

    # ---- 3) batched embedding: concat([h_f, h_b]) @ Wemb + b, written once ----
    out = (jnp.dot(hfwd_ref[...], wemb_ref[0:H, :],
                   preferred_element_type=jnp.float32)
           + jnp.dot(hbwd_ref[...], wemb_ref[H:2 * H, :],
                     preferred_element_type=jnp.float32)
           + bemb_ref[...])
    o_ref[...] = out.astype(o_ref.dtype)


def bidirectional_lstm(x, params):
    """x: (T, B, nIn) float32 -> (T, B, nOut) float32."""
    T, B, nIn = x.shape
    H = params["whh_f"].shape[0]
    nOut = params["wemb"].shape[1]
    G = 4 * H

    # Fold both directions' input weights/biases into a single matmul operand.
    wih = jnp.concatenate([params["wih_f"], params["wih_b"]], axis=1)  # (nIn, 8H)
    bih = jnp.concatenate([params["b_f"], params["b_b"]], axis=1)      # (1, 8H)
    x2d = x.reshape(T * B, nIn)

    # Explicit VMEM budget sized from the actual resident buffers (+ headroom),
    # capped well under v7x's 64 MiB physical VMEM.
    f32 = 4
    resident = f32 * (T * B * nIn + nIn * 2 * G + 2 * G + 2 * H * G
                      + 2 * H * nOut + nOut + T * B * nOut
                      + T * B * 2 * G + 2 * T * B * H)
    vmem_limit = int(min(max(2 * resident + (1 << 20), 16 << 20), 60 << 20))

    # TODO(synk): for large T*B (real CRNN sizes), tile the batch over a parallel
    # grid axis and stream x / gin / hidden-state chunks through HBM with manual
    # double-buffered DMA instead of keeping everything resident in VMEM.
    kernel = functools.partial(_bilstm_kernel, T=T, B=B)

    out2d = pl.pallas_call(
        kernel,
        out_shape=jax.ShapeDtypeStruct((T * B, nOut), jnp.float32),
        in_specs=[pl.BlockSpec(memory_space=pltpu.MemorySpace.VMEM)] * 7,
        out_specs=pl.BlockSpec(memory_space=pltpu.MemorySpace.VMEM),
        scratch_shapes=[
            pltpu.VMEM((T * B, 2 * G), jnp.float32),   # input-projected gates
            pltpu.VMEM((T * B, H), jnp.float32),       # forward hidden states
            pltpu.VMEM((T * B, H), jnp.float32),       # backward hidden states
        ],
        compiler_params=pltpu.CompilerParams(vmem_limit_bytes=vmem_limit),
    )(x2d, wih, bih, params["whh_f"], params["whh_b"],
      params["wemb"], params["bemb"])

    return out2d.reshape(T, B, nOut)


# ----------------------------- pure-JAX reference ---------------------------
def _ref_bilstm(x, p):
    T, B, _ = x.shape
    H = p["whh_f"].shape[0]

    def run_dir(xs, wih, whh, b):
        def step(carry, x_t):
            h, c = carry
            gates = x_t @ wih + h @ whh + b
            i = jax.nn.sigmoid(gates[:, 0:H])
            f = jax.nn.sigmoid(gates[:, H:2 * H])
            g = jnp.tanh(gates[:, 2 * H:3 * H])
            o = jax.nn.sigmoid(gates[:, 3 * H:4 * H])
            c = f * c + i * g
            h = o * jnp.tanh(c)
            return (h, c), h

        h0 = jnp.zeros((B, H), jnp.float32)
        c0 = jnp.zeros((B, H), jnp.float32)
        _, hs = lax.scan(step, (h0, c0), xs)
        return hs

    h_fwd = run_dir(x, p["wih_f"], p["whh_f"], p["b_f"])
    h_bwd = run_dir(x[::-1], p["wih_b"], p["whh_b"], p["b_b"])[::-1]
    rec = jnp.concatenate([h_fwd, h_bwd], axis=-1)           # (T, B, 2H)
    out = rec.reshape(T * B, 2 * H) @ p["wemb"] + p["bemb"]  # Linear
    return out.reshape(T, B, -1)


# ----------------------------- parameter setup -------------------------------
def init_params(key, nIn, nHidden, nOut):
    """Deterministic PyTorch-style uniform(-1/sqrt(H)) init. All weights are
    stored transposed (K, N) so the kernel does plain row-major matmuls.
    Gate order matches PyTorch: [i, f, g, o]."""
    H = nHidden
    k = 1.0 / np.sqrt(H)
    keys = jax.random.split(key, 10)

    def u(kk, shape):
        return jax.random.uniform(kk, shape, jnp.float32, -k, k)

    params = {
        "wih_f": u(keys[0], (nIn, 4 * H)),
        "whh_f": u(keys[1], (H, 4 * H)),
        "b_f":   (u(keys[2], (1, 4 * H)) + u(keys[3], (1, 4 * H))),  # b_ih + b_hh
        "wih_b": u(keys[4], (nIn, 4 * H)),
        "whh_b": u(keys[5], (H, 4 * H)),
        "b_b":   (u(keys[6], (1, 4 * H)) + u(keys[7], (1, 4 * H))),
        "wemb":  u(keys[8], (2 * H, nOut)),
        "bemb":  u(keys[9], (1, nOut)),
    }
    return params


if __name__ == "__main__":
    T, B, nIn, nHidden, nOut = 8, 2, 32, 32, 16

    key = jax.random.PRNGKey(0)
    kx, kp = jax.random.split(key)
    x = jax.random.normal(kx, (T, B, nIn), jnp.float32)
    params = init_params(kp, nIn, nHidden, nOut)

    out = bidirectional_lstm(x, params)
    out = jax.block_until_ready(out)

    ref = jax.block_until_ready(_ref_bilstm(x, params))
    assert out.shape == (T, B, nOut)
    np.testing.assert_allclose(np.asarray(out), np.asarray(ref), rtol=1e-4, atol=1e-4)

    print("KERNEL_OK")
</pallas_src>

<mosaic_0001>
module attributes {stable_mosaic.version = 11 : i64} {
  func.func @_bilstm_kernel(%arg0: memref<16x32xf32, #tpu.memory_space<vmem>>, %arg1: memref<32x256xf32, #tpu.memory_space<vmem>>, %arg2: memref<1x256xf32, #tpu.memory_space<vmem>>, %arg3: memref<32x128xf32, #tpu.memory_space<vmem>>, %arg4: memref<32x128xf32, #tpu.memory_space<vmem>>, %arg5: memref<64x16xf32, #tpu.memory_space<vmem>>, %arg6: memref<1x16xf32, #tpu.memory_space<vmem>>, %arg7: memref<16x16xf32, #tpu.memory_space<vmem>>, %arg8: memref<16x256xf32, #tpu.memory_space<vmem>>, %arg9: memref<16x32xf32, #tpu.memory_space<vmem>>, %arg10: memref<16x32xf32, #tpu.memory_space<vmem>>) attributes {dimension_semantics = [], scalar_prefetch = 0 : i64, scratch_operands = 3 : i64, tpu.core_type = #tpu.core_type<tc>} {
    %c0 = arith.constant 0 : index
    %c0_0 = arith.constant 0 : index
    %0 = vector.load %arg0[%c0, %c0_0] : memref<16x32xf32, #tpu.memory_space<vmem>>, vector<16x32xf32>
    %c0_1 = arith.constant 0 : index
    %c0_2 = arith.constant 0 : index
    %1 = vector.load %arg1[%c0_1, %c0_2] : memref<32x256xf32, #tpu.memory_space<vmem>>, vector<32x256xf32>
    %cst = arith.constant dense<0.000000e+00> : vector<16x256xf32>
    %2 = tpu.matmul %0, %1, %cst {dimension_numbers = #tpu.dot_dimension_numbers<[1], [0], [0], [1], [0, 0, 1, 1], [], []>} : vector<16x32xf32>, vector<32x256xf32>, vector<16x256xf32> -> vector<16x256xf32>
    %c0_3 = arith.constant 0 : index
    %c0_4 = arith.constant 0 : index
    %3 = vector.load %arg2[%c0_3, %c0_4] : memref<1x256xf32, #tpu.memory_space<vmem>>, vector<1x256xf32>
    %4 = vector.broadcast %3 : vector<1x256xf32> to vector<16x256xf32>
    %5 = arith.addf %2, %4 : vector<16x256xf32>
    %c0_5 = arith.constant 0 : index
    %c0_6 = arith.constant 0 : index
    %6 = vector.load %arg8[%c0_5, %c0_6] : memref<16x256xf32, #tpu.memory_space<vmem>>, vector<16x256xf32>
    tpu.vector_store %arg8[%c0_5, %c0_6], %5 {strides = array<i32>} : memref<16x256xf32, #tpu.memory_space<vmem>>, vector<16x256xf32>,
    %c0_7 = arith.constant 0 : index
    %c0_8 = arith.constant 0 : index
    %7 = vector.load %arg3[%c0_7, %c0_8] : memref<32x128xf32, #tpu.memory_space<vmem>>, vector<32x128xf32>
    %c0_9 = arith.constant 0 : index
    %c0_10 = arith.constant 0 : index
    %8 = vector.load %arg4[%c0_9, %c0_10] : memref<32x128xf32, #tpu.memory_space<vmem>>, vector<32x128xf32>
    %cst_11 = arith.constant 0.000000e+00 : f32
    %9 = vector.broadcast %cst_11 : f32 to vector<2x32xf32>
    %c0_12 = arith.constant 0 : index
    %c0_13 = arith.constant 0 : index
    %10 = vector.load %arg8[%c0_12, %c0_13] : memref<16x256xf32, #tpu.memory_space<vmem>>, vector<2x128xf32>
    %cst_14 = arith.constant dense<0.000000e+00> : vector<2x128xf32>
    %11 = tpu.matmul %9, %7, %cst_14 {dimension_numbers = #tpu.dot_dimension_numbers<[1], [0], [0], [1], [0, 0, 1, 1], [], []>} : vector<2x32xf32>, vector<32x128xf32>, vector<2x128xf32> -> vector<2x128xf32>
    %12 = arith.addf %10, %11 : vector<2x128xf32>
    %c14 = arith.constant 14 : index
    %c128 = arith.constant 128 : index
    %13 = vector.load %arg8[%c14, %c128] : memref<16x256xf32, #tpu.memory_space<vmem>>, vector<2x128xf32>
    %cst_15 = arith.constant dense<0.000000e+00> : vector<2x128xf32>
    %14 = tpu.matmul %9, %8, %cst_15 {dimension_numbers = #tpu.dot_dimension_numbers<[1], [0], [0], [1], [0, 0, 1, 1], [], []>} : vector<2x32xf32>, vector<32x128xf32>, vector<2x128xf32> -> vector<2x128xf32>
    %15 = arith.addf %13, %14 : vector<2x128xf32>
    %16 = vector.extract_strided_slice %12 {offsets = [0, 0], sizes = [2, 32], strides = [1, 1]} : vector<2x128xf32> to vector<2x32xf32>
    %17 = arith.negf %16 : vector<2x32xf32>
    %18 = math.exp %17 : vector<2x32xf32>
    %cst_16 = arith.constant 1.000000e+00 : f32
    %19 = vector.broadcast %cst_16 : f32 to vector<2x32xf32>
    %20 = arith.addf %19, %18 : vector<2x32xf32>
    %21 = arith.divf %19, %20 : vector<2x32xf32>
    %22 = vector.extract_strided_slice %12 {offsets = [0, 32], sizes = [2, 32], strides = [1, 1]} : vector<2x128xf32> to vector<2x32xf32>
    %23 = arith.negf %22 : vector<2x32xf32>
    %24 = math.exp %23 : vector<2x32xf32>
    %cst_17 = arith.constant 1.000000e+00 : f32
    %25 = vector.broadcast %cst_17 : f32 to vector<2x32xf32>
    %26 = arith.addf %25, %24 : vector<2x32xf32>
    %27 = arith.divf %25, %26 : vector<2x32xf32>
    %28 = vector.extract_strided_slice %12 {offsets = [0, 64], sizes = [2, 32], strides = [1, 1]} : vector<2x128xf32> to vector<2x32xf32>
    %29 = math.tanh %28 : vector<2x32xf32>
    %30 = vector.extract_strided_slice %12 {offsets = [0, 96], sizes = [2, 32], strides = [1, 1]} : vector<2x128xf32> to vector<2x32xf32>
    %31 = arith.negf %30 : vector<2x32xf32>
    %32 = math.exp %31 : vector<2x32xf32>
    %cst_18 = arith.constant 1.000000e+00 : f32
    %33 = vector.broadcast %cst_18 : f32 to vector<2x32xf32>
    %34 = arith.addf %33, %32 : vector<2x32xf32>
    %35 = arith.divf %33, %34 : vector<2x32xf32>
    %36 = arith.mulf %27, %9 : vector<2x32xf32>
    %37 = arith.mulf %21, %29 : vector<2x32xf32>
    %38 = arith.addf %36, %37 : vector<2x32xf32>
    %39 = math.tanh %38 : vector<2x32xf32>
    %40 = arith.mulf %35, %39 : vector<2x32xf32>
    %41 = vector.extract_strided_slice %15 {offsets = [0, 0], sizes = [2, 32], strides = [1, 1]} : vector<2x128xf32> to vector<2x32xf32>
    %42 = arith.negf %41 : vector<2x32xf32>
    %43 = math.exp %42 : vector<2x32xf32>
    %cst_19 = arith.constant 1.000000e+00 : f32
    %44 = vector.broadcast %cst_19 : f32 to vector<2x32xf32>
    %45 = arith.addf %44, %43 : vector<2x32xf32>
    %46 = arith.divf %44, %45 : vector<2x32xf32>
    %47 = vector.extract_strided_slice %15 {offsets = [0, 32], sizes = [2, 32], strides = [1, 1]} : vector<2x128xf32> to vector<2x32xf32>
    %48 = arith.negf %47 : vector<2x32xf32>
    %49 = math.exp %48 : vector<2x32xf32>
    %cst_20 = arith.constant 1.000000e+00 : f32
    %50 = vector.broadcast %cst_20 : f32 to vector<2x32xf32>
    %51 = arith.addf %50, %49 : vector<2x32xf32>
    %52 = arith.divf %50, %51 : vector<2x32xf32>
    %53 = vector.extract_strided_slice %15 {offsets = [0, 64], sizes = [2, 32], strides = [1, 1]} : vector<2x128xf32> to vector<2x32xf32>
    %54 = math.tanh %53 : vector<2x32xf32>
    %55 = vector.extract_strided_slice %15 {offsets = [0, 96], sizes = [2, 32], strides = [1, 1]} : vector<2x128xf32> to vector<2x32xf32>
    %56 = arith.negf %55 : vector<2x32xf32>
    %57 = math.exp %56 : vector<2x32xf32>
    %cst_21 = arith.constant 1.000000e+00 : f32
    %58 = vector.broadcast %cst_21 : f32 to vector<2x32xf32>
    %59 = arith.addf %58, %57 : vector<2x32xf32>
    %60 = arith.divf %58, %59 : vector<2x32xf32>
    %61 = arith.mulf %52, %9 : vector<2x32xf32>
    %62 = arith.mulf %46, %54 : vector<2x32xf32>
    %63 = arith.addf %61, %62 : vector<2x32xf32>
    %64 = math.tanh %63 : vector<2x32xf32>
    %65 = arith.mulf %60, %64 : vector<2x32xf32>
    %c0_22 = arith.constant 0 : index
    %c0_23 = arith.constant 0 : index
    %66 = vector.load %arg9[%c0_22, %c0_23] : memref<16x32xf32, #tpu.memory_space<vmem>>, vector<2x32xf32>
    tpu.vector_store %arg9[%c0_22, %c0_23], %40 {strides = array<i32>} : memref<16x32xf32, #tpu.memory_space<vmem>>, vector<2x32xf32>,
    %c14_24 = arith.constant 14 : index
    %c0_25 = arith.constant 0 : index
    %67 = vector.load %arg10[%c14_24, %c0_25] : memref<16x32xf32, #tpu.memory_space<vmem>>, vector<2x32xf32>
    tpu.vector_store %arg10[%c14_24, %c0_25], %65 {strides = array<i32>} : memref<16x32xf32, #tpu.memory_space<vmem>>, vector<2x32xf32>,
    %c2 = arith.constant 2 : index
    %c0_26 = arith.constant 0 : index
    %68 = vector.load %arg8[%c2, %c0_26] : memref<16x256xf32, #tpu.memory_space<vmem>>, vector<2x128xf32>
    %cst_27 = arith.constant dense<0.000000e+00> : vector<2x128xf32>
    %69 = tpu.matmul %40, %7, %cst_27 {dimension_numbers = #tpu.dot_dimension_numbers<[1], [0], [0], [1], [0, 0, 1, 1], [], []>} : vector<2x32xf32>, vector<32x128xf32>, vector<2x128xf32> -> vector<2x128xf32>
    %70 = arith.addf %68, %69 : vector<2x128xf32>
    %c12 = arith.constant 12 : index
    %c128_28 = arith.constant 128 : index
    %71 = vector.load %arg8[%c12, %c128_28] : memref<16x256xf32, #tpu.memory_space<vmem>>, vector<2x128xf32>
    %cst_29 = arith.constant dense<0.000000e+00> : vector<2x128xf32>
    %72 = tpu.matmul %65, %8, %cst_29 {dimension_numbers = #tpu.dot_dimension_numbers<[1], [0], [0], [1], [0, 0, 1, 1], [], []>} : vector<2x32xf32>, vector<32x128xf32>, vector<2x128xf32> -> vector<2x128xf32>
    %73 = arith.addf %71, %72 : vector<2x128xf32>
    %74 = vector.extract_strided_slice %70 {offsets = [0, 0], sizes = [2, 32], strides = [1, 1]} : vector<2x128xf32> to vector<2x32xf32>
    %75 = arith.negf %74 : vector<2x32xf32>
    %76 = math.exp %75 : vector<2x32xf32>
    %cst_30 = arith.constant 1.000000e+00 : f32
    %77 = vector.broadcast %cst_30 : f32 to vector<2x32xf32>
    %78 = arith.addf %77, %76 : vector<2x32xf32>
    %79 = arith.divf %77, %78 : vector<2x32xf32>
    %80 = vector.extract_strided_slice %70 {offsets = [0, 32], sizes = [2, 32], strides = [1, 1]} : vector<2x128xf32> to vector<2x32xf32>
    %81 = arith.negf %80 : vector<2x32xf32>
    %82 = math.exp %81 : vector<2x32xf32>
    %cst_31 = arith.constant 1.000000e+00 : f32
    %83 = vector.broadcast %cst_31 : f32 to vector<2x32xf32>
    %84 = arith.addf %83, %82 : vector<2x32xf32>
    %85 = arith.divf %83, %84 : vector<2x32xf32>
    %86 = vector.extract_strided_slice %70 {offsets = [0, 64], sizes = [2, 32], strides = [1, 1]} : vector<2x128xf32> to vector<2x32xf32>
    %87 = math.tanh %86 : vector<2x32xf32>
    %88 = vector.extract_strided_slice %70 {offsets = [0, 96], sizes = [2, 32], strides = [1, 1]} : vector<2x128xf32> to vector<2x32xf32>
    %89 = arith.negf %88 : vector<2x32xf32>
    %90 = math.exp %89 : vector<2x32xf32>
    %cst_32 = arith.constant 1.000000e+00 : f32
    %91 = vector.broadcast %cst_32 : f32 to vector<2x32xf32>
    %92 = arith.addf %91, %90 : vector<2x32xf32>
    %93 = arith.divf %91, %92 : vector<2x32xf32>
    %94 = arith.mulf %85, %38 : vector<2x32xf32>
    %95 = arith.mulf %79, %87 : vector<2x32xf32>
    %96 = arith.addf %94, %95 : vector<2x32xf32>
    %97 = math.tanh %96 : vector<2x32xf32>
    %98 = arith.mulf %93, %97 : vector<2x32xf32>
    %99 = vector.extract_strided_slice %73 {offsets = [0, 0], sizes = [2, 32], strides = [1, 1]} : vector<2x128xf32> to vector<2x32xf32>
    %100 = arith.negf %99 : vector<2x32xf32>
    %101 = math.exp %100 : vector<2x32xf32>
    %cst_33 = arith.constant 1.000000e+00 : f32
    %102 = vector.broadcast %cst_33 : f32 to vector<2x32xf32>
    %103 = arith.addf %102, %101 : vector<2x32xf32>
    %104 = arith.divf %102, %103 : vector<2x32xf32>
    %105 = vector.extract_strided_slice %73 {offsets = [0, 32], sizes = [2, 32], strides = [1, 1]} : vector<2x128xf32> to vector<2x32xf32>
    %106 = arith.negf %105 : vector<2x32xf32>
    %107 = math.exp %106 : vector<2x32xf32>
    %cst_34 = arith.constant 1.000000e+00 : f32
    %108 = vector.broadcast %cst_34 : f32 to vector<2x32xf32>
    %109 = arith.addf %108, %107 : vector<2x32xf32>
    %110 = arith.divf %108, %109 : vector<2x32xf32>
    %111 = vector.extract_strided_slice %73 {offsets = [0, 64], sizes = [2, 32], strides = [1, 1]} : vector<2x128xf32> to vector<2x32xf32>
    %112 = math.tanh %111 : vector<2x32xf32>
    %113 = vector.extract_strided_slice %73 {offsets = [0, 96], sizes = [2, 32], strides = [1, 1]} : vector<2x128xf32> to vector<2x32xf32>
    %114 = arith.negf %113 : vector<2x32xf32>
    %115 = math.exp %114 : vector<2x32xf32>
    %cst_35 = arith.constant 1.000000e+00 : f32
    %116 = vector.broadcast %cst_35 : f32 to vector<2x32xf32>
    %117 = arith.addf %116, %115 : vector<2x32xf32>
    %118 = arith.divf %116, %117 : vector<2x32xf32>
    %119 = arith.mulf %110, %63 : vector<2x32xf32>
    %120 = arith.mulf %104, %112 : vector<2x32xf32>
    %121 = arith.addf %119, %120 : vector<2x32xf32>
    %122 = math.tanh %121 : vector<2x32xf32>
    %123 = arith.mulf %118, %122 : vector<2x32xf32>
    %c2_36 = arith.constant 2 : index
    %c0_37 = arith.constant 0 : index
    %124 = vector.load %arg9[%c2_36, %c0_37] : memref<16x32xf32, #tpu.memory_space<vmem>>, vector<2x32xf32>
    tpu.vector_store %arg9[%c2_36, %c0_37], %98 {strides = array<i32>} : memref<16x32xf32, #tpu.memory_space<vmem>>, vector<2x32xf32>,
    %c12_38 = arith.constant 12 : index
    %c0_39 = arith.constant 0 : index
    %125 = vector.load %arg10[%c12_38, %c0_39] : memref<16x32xf32, #tpu.memory_space<vmem>>, vector<2x32xf32>
    tpu.vector_store %arg10[%c12_38, %c0_39], %123 {strides = array<i32>} : memref<16x32xf32, #tpu.memory_space<vmem>>, vector<2x32xf32>,
    %c4 = arith.constant 4 : index
    %c0_40 = arith.constant 0 : index
    %126 = vector.load %arg8[%c4, %c0_40] : memref<16x256xf32, #tpu.memory_space<vmem>>, vector<2x128xf32>
    %cst_41 = arith.constant dense<0.000000e+00> : vector<2x128xf32>
    %127 = tpu.matmul %98, %7, %cst_41 {dimension_numbers = #tpu.dot_dimension_numbers<[1], [0], [0], [1], [0, 0, 1, 1], [], []>} : vector<2x32xf32>, vector<32x128xf32>, vector<2x128xf32> -> vector<2x128xf32>
    %128 = arith.addf %126, %127 : vector<2x128xf32>
    %c10 = arith.constant 10 : index
    %c128_42 = arith.constant 128 : index
    %129 = vector.load %arg8[%c10, %c128_42] : memref<16x256xf32, #tpu.memory_space<vmem>>, vector<2x128xf32>
    %cst_43 = arith.constant dense<0.000000e+00> : vector<2x128xf32>
    %130 = tpu.matmul %123, %8, %cst_43 {dimension_numbers = #tpu.dot_dimension_numbers<[1], [0], [0], [1], [0, 0, 1, 1], [], []>} : vector<2x32xf32>, vector<32x128xf32>, vector<2x128xf32> -> vector<2x128xf32>
    %131 = arith.addf %129, %130 : vector<2x128xf32>
    %132 = vector.extract_strided_slice %128 {offsets = [0, 0], sizes = [2, 32], strides = [1, 1]} : vector<2x128xf32> to vector<2x32xf32>
    %133 = arith.negf %132 : vector<2x32xf32>
    %134 = math.exp %133 : vector<2x32xf32>
    %cst_44 = arith.constant 1.000000e+00 : f32
    %135 = vector.broadcast %cst_44 : f32 to vector<2x32xf32>
    %136 = arith.addf %135, %134 : vector<2x32xf32>
    %137 = arith.divf %135, %136 : vector<2x32xf32>
    %138 = vector.extract_strided_slice %128 {offsets = [0, 32], sizes = [2, 32], strides = [1, 1]} : vector<2x128xf32> to vector<2x32xf32>
    %139 = arith.negf %138 : vector<2x32xf32>
    %140 = math.exp %139 : vector<2x32xf32>
    %cst_45 = arith.constant 1.000000e+00 : f32
    %141 = vector.broadcast %cst_45 : f32 to vector<2x32xf32>
    %142 = arith.addf %141, %140 : vector<2x32xf32>
    %143 = arith.divf %141, %142 : vector<2x32xf32>
    %144 = vector.extract_strided_slice %128 {offsets = [0, 64], sizes = [2, 32], strides = [1, 1]} : vector<2x128xf32> to vector<2x32xf32>
    %145 = math.tanh %144 : vector<2x32xf32>
    %146 = vector.extract_strided_slice %128 {offsets = [0, 96], sizes = [2, 32], strides = [1, 1]} : vector<2x128xf32> to vector<2x32xf32>
    %147 = arith.negf %146 : vector<2x32xf32>
    %148 = math.exp %147 : vector<2x32xf32>
    %cst_46 = arith.constant 1.000000e+00 : f32
    %149 = vector.broadcast %cst_46 : f32 to vector<2x32xf32>
    %150 = arith.addf %149, %148 : vector<2x32xf32>
    %151 = arith.divf %149, %150 : vector<2x32xf32>
    %152 = arith.mulf %143, %96 : vector<2x32xf32>
    %153 = arith.mulf %137, %145 : vector<2x32xf32>
    %154 = arith.addf %152, %153 : vector<2x32xf32>
    %155 = math.tanh %154 : vector<2x32xf32>
    %156 = arith.mulf %151, %155 : vector<2x32xf32>
    %157 = vector.extract_strided_slice %131 {offsets = [0, 0], sizes = [2, 32], strides = [1, 1]} : vector<2x128xf32> to vector<2x32xf32>
    %158 = arith.negf %157 : vector<2x32xf32>
    %159 = math.exp %158 : vector<2x32xf32>
    %cst_47 = arith.constant 1.000000e+00 : f32
    %160 = vector.broadcast %cst_47 : f32 to vector<2x32xf32>
    %161 = arith.addf %160, %159 : vector<2x32xf32>
    %162 = arith.divf %160, %161 : vector<2x32xf32>
    %163 = vector.extract_strided_slice %131 {offsets = [0, 32], sizes = [2, 32], strides = [1, 1]} : vector<2x128xf32> to vector<2x32xf32>
    %164 = arith.negf %163 : vector<2x32xf32>
    %165 = math.exp %164 : vector<2x32xf32>
    %cst_48 = arith.constant 1.000000e+00 : f32
    %166 = vector.broadcast %cst_48 : f32 to vector<2x32xf32>
    %167 = arith.addf %166, %165 : vector<2x32xf32>
    %168 = arith.divf %166, %167 : vector<2x32xf32>
    %169 = vector.extract_strided_slice %131 {offsets = [0, 64], sizes = [2, 32], strides = [1, 1]} : vector<2x128xf32> to vector<2x32xf32>
    %170 = math.tanh %169 : vector<2x32xf32>
    %171 = vector.extract_strided_slice %131 {offsets = [0, 96], sizes = [2, 32], strides = [1, 1]} : vector<2x128xf32> to vector<2x32xf32>
    %172 = arith.negf %171 : vector<2x32xf32>
    %173 = math.exp %172 : vector<2x32xf32>
    %cst_49 = arith.constant 1.000000e+00 : f32
    %174 = vector.broadcast %cst_49 : f32 to vector<2x32xf32>
    %175 = arith.addf %174, %173 : vector<2x32xf32>
    %176 = arith.divf %174, %175 : vector<2x32xf32>
    %177 = arith.mulf %168, %121 : vector<2x32xf32>
    %178 = arith.mulf %162, %170 : vector<2x32xf32>
    %179 = arith.addf %177, %178 : vector<2x32xf32>
    %180 = math.tanh %179 : vector<2x32xf32>
    %181 = arith.mulf %176, %180 : vector<2x32xf32>
    %c4_50 = arith.constant 4 : index
    %c0_51 = arith.constant 0 : index
    %182 = vector.load %arg9[%c4_50, %c0_51] : memref<16x32xf32, #tpu.memory_space<vmem>>, vector<2x32xf32>
    tpu.vector_store %arg9[%c4_50, %c0_51], %156 {strides = array<i32>} : memref<16x32xf32, #tpu.memory_space<vmem>>, vector<2x32xf32>,
    %c10_52 = arith.constant 10 : index
    %c0_53 = arith.constant 0 : index
    %183 = vector.load %arg10[%c10_52, %c0_53] : memref<16x32xf32, #tpu.memory_space<vmem>>, vector<2x32xf32>
    tpu.vector_store %arg10[%c10_52, %c0_53], %181 {strides = array<i32>} : memref<16x32xf32, #tpu.memory_space<vmem>>, vector<2x32xf32>,
    %c6 = arith.constant 6 : index
    %c0_54 = arith.constant 0 : index
    %184 = vector.load %arg8[%c6, %c0_54] : memref<16x256xf32, #tpu.memory_space<vmem>>, vector<2x128xf32>
    %cst_55 = arith.constant dense<0.000000e+00> : vector<2x128xf32>
    %185 = tpu.matmul %156, %7, %cst_55 {dimension_numbers = #tpu.dot_dimension_numbers<[1], [0], [0], [1], [0, 0, 1, 1], [], []>} : vector<2x32xf32>, vector<32x128xf32>, vector<2x128xf32> -> vector<2x128xf32>
    %186 = arith.addf %184, %185 : vector<2x128xf32>
    %c8 = arith.constant 8 : index
    %c128_56 = arith.constant 128 : index
    %187 = vector.load %arg8[%c8, %c128_56] : memref<16x256xf32, #tpu.memory_space<vmem>>, vector<2x128xf32>
    %cst_57 = arith.constant dense<0.000000e+00> : vector<2x128xf32>
    %188 = tpu.matmul %181, %8, %cst_57 {dimension_numbers = #tpu.dot_dimension_numbers<[1], [0], [0], [1], [0, 0, 1, 1], [], []>} : vector<2x32xf32>, vector<32x128xf32>, vector<2x128xf32> -> vector<2x128xf32>
    %189 = arith.addf %187, %188 : vector<2x128xf32>
    %190 = vector.extract_strided_slice %186 {offsets = [0, 0], sizes = [2, 32], strides = [1, 1]} : vector<2x128xf32> to vector<2x32xf32>
    %191 = arith.negf %190 : vector<2x32xf32>
    %192 = math.exp %191 : vector<2x32xf32>
    %cst_58 = arith.constant 1.000000e+00 : f32
    %193 = vector.broadcast %cst_58 : f32 to vector<2x32xf32>
    %194 = arith.addf %193, %192 : vector<2x32xf32>
    %195 = arith.divf %193, %194 : vector<2x32xf32>
    %196 = vector.extract_strided_slice %186 {offsets = [0, 32], sizes = [2, 32], strides = [1, 1]} : vector<2x128xf32> to vector<2x32xf32>
    %197 = arith.negf %196 : vector<2x32xf32>
    %198 = math.exp %197 : vector<2x32xf32>
    %cst_59 = arith.constant 1.000000e+00 : f32
    %199 = vector.broadcast %cst_59 : f32 to vector<2x32xf32>
    %200 = arith.addf %199, %198 : vector<2x32xf32>
    %201 = arith.divf %199, %200 : vector<2x32xf32>
    %202 = vector.extract_strided_slice %186 {offsets = [0, 64], sizes = [2, 32], strides = [1, 1]} : vector<2x128xf32> to vector<2x32xf32>
    %203 = math.tanh %202 : vector<2x32xf32>
    %204 = vector.extract_strided_slice %186 {offsets = [0, 96], sizes = [2, 32], strides = [1, 1]} : vector<2x128xf32> to vector<2x32xf32>
    %205 = arith.negf %204 : vector<2x32xf32>
    %206 = math.exp %205 : vector<2x32xf32>
    %cst_60 = arith.constant 1.000000e+00 : f32
    %207 = vector.broadcast %cst_60 : f32 to vector<2x32xf32>
    %208 = arith.addf %207, %206 : vector<2x32xf32>
    %209 = arith.divf %207, %208 : vector<2x32xf32>
    %210 = arith.mulf %201, %154 : vector<2x32xf32>
    %211 = arith.mulf %195, %203 : vector<2x32xf32>
    %212 = arith.addf %210, %211 : vector<2x32xf32>
    %213 = math.tanh %212 : vector<2x32xf32>
    %214 = arith.mulf %209, %213 : vector<2x32xf32>
    %215 = vector.extract_strided_slice %189 {offsets = [0, 0], sizes = [2, 32], strides = [1, 1]} : vector<2x128xf32> to vector<2x32xf32>
    %216 = arith.negf %215 : vector<2x32xf32>
    %217 = math.exp %216 : vector<2x32xf32>
    %cst_61 = arith.constant 1.000000e+00 : f32
    %218 = vector.broadcast %cst_61 : f32 to vector<2x32xf32>
    %219 = arith.addf %218, %217 : vector<2x32xf32>
    %220 = arith.divf %218, %219 : vector<2x32xf32>
    %221 = vector.extract_strided_slice %189 {offsets = [0, 32], sizes = [2, 32], strides = [1, 1]} : vector<2x128xf32> to vector<2x32xf32>
    %222 = arith.negf %221 : vector<2x32xf32>
    %223 = math.exp %222 : vector<2x32xf32>
    %cst_62 = arith.constant 1.000000e+00 : f32
    %224 = vector.broadcast %cst_62 : f32 to vector<2x32xf32>
    %225 = arith.addf %224, %223 : vector<2x32xf32>
    %226 = arith.divf %224, %225 : vector<2x32xf32>
    %227 = vector.extract_strided_slice %189 {offsets = [0, 64], sizes = [2, 32], strides = [1, 1]} : vector<2x128xf32> to vector<2x32xf32>
    %228 = math.tanh %227 : vector<2x32xf32>
    %229 = vector.extract_strided_slice %189 {offsets = [0, 96], sizes = [2, 32], strides = [1, 1]} : vector<2x128xf32> to vector<2x32xf32>
    %230 = arith.negf %229 : vector<2x32xf32>
    %231 = math.exp %230 : vector<2x32xf32>
    %cst_63 = arith.constant 1.000000e+00 : f32
    %232 = vector.broadcast %cst_63 : f32 to vector<2x32xf32>
    %233 = arith.addf %232, %231 : vector<2x32xf32>
    %234 = arith.divf %232, %233 : vector<2x32xf32>
    %235 = arith.mulf %226, %179 : vector<2x32xf32>
    %236 = arith.mulf %220, %228 : vector<2x32xf32>
    %237 = arith.addf %235, %236 : vector<2x32xf32>
    %238 = math.tanh %237 : vector<2x32xf32>
    %239 = arith.mulf %234, %238 : vector<2x32xf32>
    %c6_64 = arith.constant 6 : index
    %c0_65 = arith.constant 0 : index
    %240 = vector.load %arg9[%c6_64, %c0_65] : memref<16x32xf32, #tpu.memory_space<vmem>>, vector<2x32xf32>
    tpu.vector_store %arg9[%c6_64, %c0_65], %214 {strides = array<i32>} : memref<16x32xf32, #tpu.memory_space<vmem>>, vector<2x32xf32>,
    %c8_66 = arith.constant 8 : index
    %c0_67 = arith.constant 0 : index
    %241 = vector.load %arg10[%c8_66, %c0_67] : memref<16x32xf32, #tpu.memory_space<vmem>>, vector<2x32xf32>
    tpu.vector_store %arg10[%c8_66, %c0_67], %239 {strides = array<i32>} : memref<16x32xf32, #tpu.memory_space<vmem>>, vector<2x32xf32>,
    %c8_68 = arith.constant 8 : index
    %c0_69 = arith.constant 0 : index
    %242 = vector.load %arg8[%c8_68, %c0_69] : memref<16x256xf32, #tpu.memory_space<vmem>>, vector<2x128xf32>
    %cst_70 = arith.constant dense<0.000000e+00> : vector<2x128xf32>
    %243 = tpu.matmul %214, %7, %cst_70 {dimension_numbers = #tpu.dot_dimension_numbers<[1], [0], [0], [1], [0, 0, 1, 1], [], []>} : vector<2x32xf32>, vector<32x128xf32>, vector<2x128xf32> -> vector<2x128xf32>
    %244 = arith.addf %242, %243 : vector<2x128xf32>
    %c6_71 = arith.constant 6 : index
    %c128_72 = arith.constant 128 : index
    %245 = vector.load %arg8[%c6_71, %c128_72] : memref<16x256xf32, #tpu.memory_space<vmem>>, vector<2x128xf32>
    %cst_73 = arith.constant dense<0.000000e+00> : vector<2x128xf32>
    %246 = tpu.matmul %239, %8, %cst_73 {dimension_numbers = #tpu.dot_dimension_numbers<[1], [0], [0], [1], [0, 0, 1, 1], [], []>} : vector<2x32xf32>, vector<32x128xf32>, vector<2x128xf32> -> vector<2x128xf32>
    %247 = arith.addf %245, %246 : vector<2x128xf32>
    %248 = vector.extract_strided_slice %244 {offsets = [0, 0], sizes = [2, 32], strides = [1, 1]} : vector<2x128xf32> to vector<2x32xf32>
    %249 = arith.negf %248 : vector<2x32xf32>
    %250 = math.exp %249 : vector<2x32xf32>
    %cst_74 = arith.constant 1.000000e+00 : f32
    %251 = vector.broadcast %cst_74 : f32 to vector<2x32xf32>
    %252 = arith.addf %251, %250 : vector<2x32xf32>
    %253 = arith.divf %251, %252 : vector<2x32xf32>
    %254 = vector.extract_strided_slice %244 {offsets = [0, 32], sizes = [2, 32], strides = [1, 1]} : vector<2x128xf32> to vector<2x32xf32>
    %255 = arith.negf %254 : vector<2x32xf32>
    %256 = math.exp %255 : vector<2x32xf32>
    %cst_75 = arith.constant 1.000000e+00 : f32
    %257 = vector.broadcast %cst_75 : f32 to vector<2x32xf32>
    %258 = arith.addf %257, %256 : vector<2x32xf32>
    %259 = arith.divf %257, %258 : vector<2x32xf32>
    %260 = vector.extract_strided_slice %244 {offsets = [0, 64], sizes = [2, 32], strides = [1, 1]} : vector<2x128xf32> to vector<2x32xf32>
    %261 = math.tanh %260 : vector<2x32xf32>
    %262 = vector.extract_strided_slice %244 {offsets = [0, 96], sizes = [2, 32], strides = [1, 1]} : vector<2x128xf32> to vector<2x32xf32>
    %263 = arith.negf %262 : vector<2x32xf32>
    %264 = math.exp %263 : vector<2x32xf32>
    %cst_76 = arith.constant 1.000000e+00 : f32
    %265 = vector.broadcast %cst_76 : f32 to vector<2x32xf32>
    %266 = arith.addf %265, %264 : vector<2x32xf32>
    %267 = arith.divf %265, %266 : vector<2x32xf32>
    %268 = arith.mulf %259, %212 : vector<2x32xf32>
    %269 = arith.mulf %253, %261 : vector<2x32xf32>
    %270 = arith.addf %268, %269 : vector<2x32xf32>
    %271 = math.tanh %270 : vector<2x32xf32>
    %272 = arith.mulf %267, %271 : vector<2x32xf32>
    %273 = vector.extract_strided_slice %247 {offsets = [0, 0], sizes = [2, 32], strides = [1, 1]} : vector<2x128xf32> to vector<2x32xf32>
    %274 = arith.negf %273 : vector<2x32xf32>
    %275 = math.exp %274 : vector<2x32xf32>
    %cst_77 = arith.constant 1.000000e+00 : f32
    %276 = vector.broadcast %cst_77 : f32 to vector<2x32xf32>
    %277 = arith.addf %276, %275 : vector<2x32xf32>
    %278 = arith.divf %276, %277 : vector<2x32xf32>
    %279 = vector.extract_strided_slice %247 {offsets = [0, 32], sizes = [2, 32], strides = [1, 1]} : vector<2x128xf32> to vector<2x32xf32>
    %280 = arith.negf %279 : vector<2x32xf32>
    %281 = math.exp %280 : vector<2x32xf32>
    %cst_78 = arith.constant 1.000000e+00 : f32
    %282 = vector.broadcast %cst_78 : f32 to vector<2x32xf32>
    %283 = arith.addf %282, %281 : vector<2x32xf32>
    %284 = arith.divf %282, %283 : vector<2x32xf32>
    %285 = vector.extract_strided_slice %247 {offsets = [0, 64], sizes = [2, 32], strides = [1, 1]} : vector<2x128xf32> to vector<2x32xf32>
    %286 = math.tanh %285 : vector<2x32xf32>
    %287 = vector.extract_strided_slice %247 {offsets = [0, 96], sizes = [2, 32], strides = [1, 1]} : vector<2x128xf32> to vector<2x32xf32>
    %288 = arith.negf %287 : vector<2x32xf32>
    %289 = math.exp %288 : vector<2x32xf32>
    %cst_79 = arith.constant 1.000000e+00 : f32
    %290 = vector.broadcast %cst_79 : f32 to vector<2x32xf32>
    %291 = arith.addf %290, %289 : vector<2x32xf32>
    %292 = arith.divf %290, %291 : vector<2x32xf32>
    %293 = arith.mulf %284, %237 : vector<2x32xf32>
    %294 = arith.mulf %278, %286 : vector<2x32xf32>
    %295 = arith.addf %293, %294 : vector<2x32xf32>
    %296 = math.tanh %295 : vector<2x32xf32>
    %297 = arith.mulf %292, %296 : vector<2x32xf32>
    %c8_80 = arith.constant 8 : index
    %c0_81 = arith.constant 0 : index
    %298 = vector.load %arg9[%c8_80, %c0_81] : memref<16x32xf32, #tpu.memory_space<vmem>>, vector<2x32xf32>
    tpu.vector_store %arg9[%c8_80, %c0_81], %272 {strides = array<i32>} : memref<16x32xf32, #tpu.memory_space<vmem>>, vector<2x32xf32>,
    %c6_82 = arith.constant 6 : index
    %c0_83 = arith.constant 0 : index
    %299 = vector.load %arg10[%c6_82, %c0_83] : memref<16x32xf32, #tpu.memory_space<vmem>>, vector<2x32xf32>
    tpu.vector_store %arg10[%c6_82, %c0_83], %297 {strides = array<i32>} : memref<16x32xf32, #tpu.memory_space<vmem>>, vector<2x32xf32>,
    %c10_84 = arith.constant 10 : index
    %c0_85 = arith.constant 0 : index
    %300 = vector.load %arg8[%c10_84, %c0_85] : memref<16x256xf32, #tpu.memory_space<vmem>>, vector<2x128xf32>
    %cst_86 = arith.constant dense<0.000000e+00> : vector<2x128xf32>
    %301 = tpu.matmul %272, %7, %cst_86 {dimension_numbers = #tpu.dot_dimension_numbers<[1], [0], [0], [1], [0, 0, 1, 1], [], []>} : vector<2x32xf32>, vector<32x128xf32>, vector<2x128xf32> -> vector<2x128xf32>
    %302 = arith.addf %300, %301 : vector<2x128xf32>
    %c4_87 = arith.constant 4 : index
    %c128_88 = arith.constant 128 : index
    %303 = vector.load %arg8[%c4_87, %c128_88] : memref<16x256xf32, #tpu.memory_space<vmem>>, vector<2x128xf32>
    %cst_89 = arith.constant dense<0.000000e+00> : vector<2x128xf32>
    %304 = tpu.matmul %297, %8, %cst_89 {dimension_numbers = #tpu.dot_dimension_numbers<[1], [0], [0], [1], [0, 0, 1, 1], [], []>} : vector<2x32xf32>, vector<32x128xf32>, vector<2x128xf32> -> vector<2x128xf32>
    %305 = arith.addf %303, %304 : vector<2x128xf32>
    %306 = vector.extract_strided_slice %302 {offsets = [0, 0], sizes = [2, 32], strides = [1, 1]} : vector<2x128xf32> to vector<2x32xf32>
    %307 = arith.negf %306 : vector<2x32xf32>
    %308 = math.exp %307 : vector<2x32xf32>
    %cst_90 = arith.constant 1.000000e+00 : f32
    %309 = vector.broadcast %cst_90 : f32 to vector<2x32xf32>
    %310 = arith.addf %309, %308 : vector<2x32xf32>
    %311 = arith.divf %309, %310 : vector<2x32xf32>
    %312 = vector.extract_strided_slice %302 {offsets = [0, 32], sizes = [2, 32], strides = [1, 1]} : vector<2x128xf32> to vector<2x32xf32>
    %313 = arith.negf %312 : vector<2x32xf32>
    %314 = math.exp %313 : vector<2x32xf32>
    %cst_91 = arith.constant 1.000000e+00 : f32
    %315 = vector.broadcast %cst_91 : f32 to vector<2x32xf32>
    %316 = arith.addf %315, %314 : vector<2x32xf32>
    %317 = arith.divf %315, %316 : vector<2x32xf32>
    %318 = vector.extract_strided_slice %302 {offsets = [0, 64], sizes = [2, 32], strides = [1, 1]} : vector<2x128xf32> to vector<2x32xf32>
    %319 = math.tanh %318 : vector<2x32xf32>
    %320 = vector.extract_strided_slice %302 {offsets = [0, 96], sizes = [2, 32], strides = [1, 1]} : vector<2x128xf32> to vector<2x32xf32>
    %321 = arith.negf %320 : vector<2x32xf32>
    %322 = math.exp %321 : vector<2x32xf32>
    %cst_92 = arith.constant 1.000000e+00 : f32
    %323 = vector.broadcast %cst_92 : f32 to vector<2x32xf32>
    %324 = arith.addf %323, %322 : vector<2x32xf32>
    %325 = arith.divf %323, %324 : vector<2x32xf32>
    %326 = arith.mulf %317, %270 : vector<2x32xf32>
    %327 = arith.mulf %311, %319 : vector<2x32xf32>
    %328 = arith.addf %326, %327 : vector<2x32xf32>
    %329 = math.tanh %328 : vector<2x32xf32>
    %330 = arith.mulf %325, %329 : vector<2x32xf32>
    %331 = vector.extract_strided_slice %305 {offsets = [0, 0], sizes = [2, 32], strides = [1, 1]} : vector<2x128xf32> to vector<2x32xf32>
    %332 = arith.negf %331 : vector<2x32xf32>
    %333 = math.exp %332 : vector<2x32xf32>
    %cst_93 = arith.constant 1.000000e+00 : f32
    %334 = vector.broadcast %cst_93 : f32 to vector<2x32xf32>
    %335 = arith.addf %334, %333 : vector<2x32xf32>
    %336 = arith.divf %334, %335 : vector<2x32xf32>
    %337 = vector.extract_strided_slice %305 {offsets = [0, 32], sizes = [2, 32], strides = [1, 1]} : vector<2x128xf32> to vector<2x32xf32>
    %338 = arith.negf %337 : vector<2x32xf32>
    %339 = math.exp %338 : vector<2x32xf32>
    %cst_94 = arith.constant 1.000000e+00 : f32
    %340 = vector.broadcast %cst_94 : f32 to vector<2x32xf32>
    %341 = arith.addf %340, %339 : vector<2x32xf32>
    %342 = arith.divf %340, %341 : vector<2x32xf32>
    %343 = vector.extract_strided_slice %305 {offsets = [0, 64], sizes = [2, 32], strides = [1, 1]} : vector<2x128xf32> to vector<2x32xf32>
    %344 = math.tanh %343 : vector<2x32xf32>
    %345 = vector.extract_strided_slice %305 {offsets = [0, 96], sizes = [2, 32], strides = [1, 1]} : vector<2x128xf32> to vector<2x32xf32>
    %346 = arith.negf %345 : vector<2x32xf32>
    %347 = math.exp %346 : vector<2x32xf32>
    %cst_95 = arith.constant 1.000000e+00 : f32
    %348 = vector.broadcast %cst_95 : f32 to vector<2x32xf32>
    %349 = arith.addf %348, %347 : vector<2x32xf32>
    %350 = arith.divf %348, %349 : vector<2x32xf32>
    %351 = arith.mulf %342, %295 : vector<2x32xf32>
    %352 = arith.mulf %336, %344 : vector<2x32xf32>
    %353 = arith.addf %351, %352 : vector<2x32xf32>
    %354 = math.tanh %353 : vector<2x32xf32>
    %355 = arith.mulf %350, %354 : vector<2x32xf32>
    %c10_96 = arith.constant 10 : index
    %c0_97 = arith.constant 0 : index
    %356 = vector.load %arg9[%c10_96, %c0_97] : memref<16x32xf32, #tpu.memory_space<vmem>>, vector<2x32xf32>
    tpu.vector_store %arg9[%c10_96, %c0_97], %330 {strides = array<i32>} : memref<16x32xf32, #tpu.memory_space<vmem>>, vector<2x32xf32>,
    %c4_98 = arith.constant 4 : index
    %c0_99 = arith.constant 0 : index
    %357 = vector.load %arg10[%c4_98, %c0_99] : memref<16x32xf32, #tpu.memory_space<vmem>>, vector<2x32xf32>
    tpu.vector_store %arg10[%c4_98, %c0_99], %355 {strides = array<i32>} : memref<16x32xf32, #tpu.memory_space<vmem>>, vector<2x32xf32>,
    %c12_100 = arith.constant 12 : index
    %c0_101 = arith.constant 0 : index
    %358 = vector.load %arg8[%c12_100, %c0_101] : memref<16x256xf32, #tpu.memory_space<vmem>>, vector<2x128xf32>
    %cst_102 = arith.constant dense<0.000000e+00> : vector<2x128xf32>
    %359 = tpu.matmul %330, %7, %cst_102 {dimension_numbers = #tpu.dot_dimension_numbers<[1], [0], [0], [1], [0, 0, 1, 1], [], []>} : vector<2x32xf32>, vector<32x128xf32>, vector<2x128xf32> -> vector<2x128xf32>
    %360 = arith.addf %358, %359 : vector<2x128xf32>
    %c2_103 = arith.constant 2 : index
    %c128_104 = arith.constant 128 : index
    %361 = vector.load %arg8[%c2_103, %c128_104] : memref<16x256xf32, #tpu.memory_space<vmem>>, vector<2x128xf32>
    %cst_105 = arith.constant dense<0.000000e+00> : vector<2x128xf32>
    %362 = tpu.matmul %355, %8, %cst_105 {dimension_numbers = #tpu.dot_dimension_numbers<[1], [0], [0], [1], [0, 0, 1, 1], [], []>} : vector<2x32xf32>, vector<32x128xf32>, vector<2x128xf32> -> vector<2x128xf32>
    %363 = arith.addf %361, %362 : vector<2x128xf32>
    %364 = vector.extract_strided_slice %360 {offsets = [0, 0], sizes = [2, 32], strides = [1, 1]} : vector<2x128xf32> to vector<2x32xf32>
    %365 = arith.negf %364 : vector<2x32xf32>
    %366 = math.exp %365 : vector<2x32xf32>
    %cst_106 = arith.constant 1.000000e+00 : f32
    %367 = vector.broadcast %cst_106 : f32 to vector<2x32xf32>
    %368 = arith.addf %367, %366 : vector<2x32xf32>
    %369 = arith.divf %367, %368 : vector<2x32xf32>
    %370 = vector.extract_strided_slice %360 {offsets = [0, 32], sizes = [2, 32], strides = [1, 1]} : vector<2x128xf32> to vector<2x32xf32>
    %371 = arith.negf %370 : vector<2x32xf32>
    %372 = math.exp %371 : vector<2x32xf32>
    %cst_107 = arith.constant 1.000000e+00 : f32
    %373 = vector.broadcast %cst_107 : f32 to vector<2x32xf32>
    %374 = arith.addf %373, %372 : vector<2x32xf32>
    %375 = arith.divf %373, %374 : vector<2x32xf32>
    %376 = vector.extract_strided_slice %360 {offsets = [0, 64], sizes = [2, 32], strides = [1, 1]} : vector<2x128xf32> to vector<2x32xf32>
    %377 = math.tanh %376 : vector<2x32xf32>
    %378 = vector.extract_strided_slice %360 {offsets = [0, 96], sizes = [2, 32], strides = [1, 1]} : vector<2x128xf32> to vector<2x32xf32>
    %379 = arith.negf %378 : vector<2x32xf32>
    %380 = math.exp %379 : vector<2x32xf32>
    %cst_108 = arith.constant 1.000000e+00 : f32
    %381 = vector.broadcast %cst_108 : f32 to vector<2x32xf32>
    %382 = arith.addf %381, %380 : vector<2x32xf32>
    %383 = arith.divf %381, %382 : vector<2x32xf32>
    %384 = arith.mulf %375, %328 : vector<2x32xf32>
    %385 = arith.mulf %369, %377 : vector<2x32xf32>
    %386 = arith.addf %384, %385 : vector<2x32xf32>
    %387 = math.tanh %386 : vector<2x32xf32>
    %388 = arith.mulf %383, %387 : vector<2x32xf32>
    %389 = vector.extract_strided_slice %363 {offsets = [0, 0], sizes = [2, 32], strides = [1, 1]} : vector<2x128xf32> to vector<2x32xf32>
    %390 = arith.negf %389 : vector<2x32xf32>
    %391 = math.exp %390 : vector<2x32xf32>
    %cst_109 = arith.constant 1.000000e+00 : f32
    %392 = vector.broadcast %cst_109 : f32 to vector<2x32xf32>
    %393 = arith.addf %392, %391 : vector<2x32xf32>
    %394 = arith.divf %392, %393 : vector<2x32xf32>
    %395 = vector.extract_strided_slice %363 {offsets = [0, 32], sizes = [2, 32], strides = [1, 1]} : vector<2x128xf32> to vector<2x32xf32>
    %396 = arith.negf %395 : vector<2x32xf32>
    %397 = math.exp %396 : vector<2x32xf32>
    %cst_110 = arith.constant 1.000000e+00 : f32
    %398 = vector.broadcast %cst_110 : f32 to vector<2x32xf32>
    %399 = arith.addf %398, %397 : vector<2x32xf32>
    %400 = arith.divf %398, %399 : vector<2x32xf32>
    %401 = vector.extract_strided_slice %363 {offsets = [0, 64], sizes = [2, 32], strides = [1, 1]} : vector<2x128xf32> to vector<2x32xf32>
    %402 = math.tanh %401 : vector<2x32xf32>
    %403 = vector.extract_strided_slice %363 {offsets = [0, 96], sizes = [2, 32], strides = [1, 1]} : vector<2x128xf32> to vector<2x32xf32>
    %404 = arith.negf %403 : vector<2x32xf32>
    %405 = math.exp %404 : vector<2x32xf32>
    %cst_111 = arith.constant 1.000000e+00 : f32
    %406 = vector.broadcast %cst_111 : f32 to vector<2x32xf32>
    %407 = arith.addf %406, %405 : vector<2x32xf32>
    %408 = arith.divf %406, %407 : vector<2x32xf32>
    %409 = arith.mulf %400, %353 : vector<2x32xf32>
    %410 = arith.mulf %394, %402 : vector<2x32xf32>
    %411 = arith.addf %409, %410 : vector<2x32xf32>
    %412 = math.tanh %411 : vector<2x32xf32>
    %413 = arith.mulf %408, %412 : vector<2x32xf32>
    %c12_112 = arith.constant 12 : index
    %c0_113 = arith.constant 0 : index
    %414 = vector.load %arg9[%c12_112, %c0_113] : memref<16x32xf32, #tpu.memory_space<vmem>>, vector<2x32xf32>
    tpu.vector_store %arg9[%c12_112, %c0_113], %388 {strides = array<i32>} : memref<16x32xf32, #tpu.memory_space<vmem>>, vector<2x32xf32>,
    %c2_114 = arith.constant 2 : index
    %c0_115 = arith.constant 0 : index
    %415 = vector.load %arg10[%c2_114, %c0_115] : memref<16x32xf32, #tpu.memory_space<vmem>>, vector<2x32xf32>
    tpu.vector_store %arg10[%c2_114, %c0_115], %413 {strides = array<i32>} : memref<16x32xf32, #tpu.memory_space<vmem>>, vector<2x32xf32>,
    %c14_116 = arith.constant 14 : index
    %c0_117 = arith.constant 0 : index
    %416 = vector.load %arg8[%c14_116, %c0_117] : memref<16x256xf32, #tpu.memory_space<vmem>>, vector<2x128xf32>
    %cst_118 = arith.constant dense<0.000000e+00> : vector<2x128xf32>
    %417 = tpu.matmul %388, %7, %cst_118 {dimension_numbers = #tpu.dot_dimension_numbers<[1], [0], [0], [1], [0, 0, 1, 1], [], []>} : vector<2x32xf32>, vector<32x128xf32>, vector<2x128xf32> -> vector<2x128xf32>
    %418 = arith.addf %416, %417 : vector<2x128xf32>
    %c0_119 = arith.constant 0 : index
    %c128_120 = arith.constant 128 : index
    %419 = vector.load %arg8[%c0_119, %c128_120] : memref<16x256xf32, #tpu.memory_space<vmem>>, vector<2x128xf32>
    %cst_121 = arith.constant dense<0.000000e+00> : vector<2x128xf32>
    %420 = tpu.matmul %413, %8, %cst_121 {dimension_numbers = #tpu.dot_dimension_numbers<[1], [0], [0], [1], [0, 0, 1, 1], [], []>} : vector<2x32xf32>, vector<32x128xf32>, vector<2x128xf32> -> vector<2x128xf32>
    %421 = arith.addf %419, %420 : vector<2x128xf32>
    %422 = vector.extract_strided_slice %418 {offsets = [0, 0], sizes = [2, 32], strides = [1, 1]} : vector<2x128xf32> to vector<2x32xf32>
    %423 = arith.negf %422 : vector<2x32xf32>
    %424 = math.exp %423 : vector<2x32xf32>
    %cst_122 = arith.constant 1.000000e+00 : f32
    %425 = vector.broadcast %cst_122 : f32 to vector<2x32xf32>
    %426 = arith.addf %425, %424 : vector<2x32xf32>
    %427 = arith.divf %425, %426 : vector<2x32xf32>
    %428 = vector.extract_strided_slice %418 {offsets = [0, 32], sizes = [2, 32], strides = [1, 1]} : vector<2x128xf32> to vector<2x32xf32>
    %429 = arith.negf %428 : vector<2x32xf32>
    %430 = math.exp %429 : vector<2x32xf32>
    %cst_123 = arith.constant 1.000000e+00 : f32
    %431 = vector.broadcast %cst_123 : f32 to vector<2x32xf32>
    %432 = arith.addf %431, %430 : vector<2x32xf32>
    %433 = arith.divf %431, %432 : vector<2x32xf32>
    %434 = vector.extract_strided_slice %418 {offsets = [0, 64], sizes = [2, 32], strides = [1, 1]} : vector<2x128xf32> to vector<2x32xf32>
    %435 = math.tanh %434 : vector<2x32xf32>
    %436 = vector.extract_strided_slice %418 {offsets = [0, 96], sizes = [2, 32], strides = [1, 1]} : vector<2x128xf32> to vector<2x32xf32>
    %437 = arith.negf %436 : vector<2x32xf32>
    %438 = math.exp %437 : vector<2x32xf32>
    %cst_124 = arith.constant 1.000000e+00 : f32
    %439 = vector.broadcast %cst_124 : f32 to vector<2x32xf32>
    %440 = arith.addf %439, %438 : vector<2x32xf32>
    %441 = arith.divf %439, %440 : vector<2x32xf32>
    %442 = arith.mulf %433, %386 : vector<2x32xf32>
    %443 = arith.mulf %427, %435 : vector<2x32xf32>
    %444 = arith.addf %442, %443 : vector<2x32xf32>
    %445 = math.tanh %444 : vector<2x32xf32>
    %446 = arith.mulf %441, %445 : vector<2x32xf32>
    %447 = vector.extract_strided_slice %421 {offsets = [0, 0], sizes = [2, 32], strides = [1, 1]} : vector<2x128xf32> to vector<2x32xf32>
    %448 = arith.negf %447 : vector<2x32xf32>
    %449 = math.exp %448 : vector<2x32xf32>
    %cst_125 = arith.constant 1.000000e+00 : f32
    %450 = vector.broadcast %cst_125 : f32 to vector<2x32xf32>
    %451 = arith.addf %450, %449 : vector<2x32xf32>
    %452 = arith.divf %450, %451 : vector<2x32xf32>
    %453 = vector.extract_strided_slice %421 {offsets = [0, 32], sizes = [2, 32], strides = [1, 1]} : vector<2x128xf32> to vector<2x32xf32>
    %454 = arith.negf %453 : vector<2x32xf32>
    %455 = math.exp %454 : vector<2x32xf32>
    %cst_126 = arith.constant 1.000000e+00 : f32
    %456 = vector.broadcast %cst_126 : f32 to vector<2x32xf32>
    %457 = arith.addf %456, %455 : vector<2x32xf32>
    %458 = arith.divf %456, %457 : vector<2x32xf32>
    %459 = vector.extract_strided_slice %421 {offsets = [0, 64], sizes = [2, 32], strides = [1, 1]} : vector<2x128xf32> to vector<2x32xf32>
    %460 = math.tanh %459 : vector<2x32xf32>
    %461 = vector.extract_strided_slice %421 {offsets = [0, 96], sizes = [2, 32], strides = [1, 1]} : vector<2x128xf32> to vector<2x32xf32>
    %462 = arith.negf %461 : vector<2x32xf32>
    %463 = math.exp %462 : vector<2x32xf32>
    %cst_127 = arith.constant 1.000000e+00 : f32
    %464 = vector.broadcast %cst_127 : f32 to vector<2x32xf32>
    %465 = arith.addf %464, %463 : vector<2x32xf32>
    %466 = arith.divf %464, %465 : vector<2x32xf32>
    %467 = arith.mulf %458, %411 : vector<2x32xf32>
    %468 = arith.mulf %452, %460 : vector<2x32xf32>
    %469 = arith.addf %467, %468 : vector<2x32xf32>
    %470 = math.tanh %469 : vector<2x32xf32>
    %471 = arith.mulf %466, %470 : vector<2x32xf32>
    %c14_128 = arith.constant 14 : index
    %c0_129 = arith.constant 0 : index
    %472 = vector.load %arg9[%c14_128, %c0_129] : memref<16x32xf32, #tpu.memory_space<vmem>>, vector<2x32xf32>
    tpu.vector_store %arg9[%c14_128, %c0_129], %446 {strides = array<i32>} : memref<16x32xf32, #tpu.memory_space<vmem>>, vector<2x32xf32>,
    %c0_130 = arith.constant 0 : index
    %c0_131 = arith.constant 0 : index
    %473 = vector.load %arg10[%c0_130, %c0_131] : memref<16x32xf32, #tpu.memory_space<vmem>>, vector<2x32xf32>
    tpu.vector_store %arg10[%c0_130, %c0_131], %471 {strides = array<i32>} : memref<16x32xf32, #tpu.memory_space<vmem>>, vector<2x32xf32>,
    %c0_132 = arith.constant 0 : index
    %c0_133 = arith.constant 0 : index
    %474 = vector.load %arg9[%c0_132, %c0_133] : memref<16x32xf32, #tpu.memory_space<vmem>>, vector<16x32xf32>
    %c0_134 = arith.constant 0 : index
    %c0_135 = arith.constant 0 : index
    %475 = vector.load %arg5[%c0_134, %c0_135] : memref<64x16xf32, #tpu.memory_space<vmem>>, vector<32x16xf32>
    %cst_136 = arith.constant dense<0.000000e+00> : vector<16x16xf32>
    %476 = tpu.matmul %474, %475, %cst_136 {dimension_numbers = #tpu.dot_dimension_numbers<[1], [0], [0], [1], [0, 0, 1, 1], [], []>} : vector<16x32xf32>, vector<32x16xf32>, vector<16x16xf32> -> vector<16x16xf32>
    %c0_137 = arith.constant 0 : index
    %c0_138 = arith.constant 0 : index
    %477 = vector.load %arg10[%c0_137, %c0_138] : memref<16x32xf32, #tpu.memory_space<vmem>>, vector<16x32xf32>
    %c32 = arith.constant 32 : index
    %c0_139 = arith.constant 0 : index
    %478 = vector.load %arg5[%c32, %c0_139] : memref<64x16xf32, #tpu.memory_space<vmem>>, vector<32x16xf32>
    %cst_140 = arith.constant dense<0.000000e+00> : vector<16x16xf32>
    %479 = tpu.matmul %477, %478, %cst_140 {dimension_numbers = #tpu.dot_dimension_numbers<[1], [0], [0], [1], [0, 0, 1, 1], [], []>} : vector<16x32xf32>, vector<32x16xf32>, vector<16x16xf32> -> vector<16x16xf32>
    %480 = arith.addf %476, %479 : vector<16x16xf32>
    %c0_141 = arith.constant 0 : index
    %c0_142 = arith.constant 0 : index
    %481 = vector.load %arg6[%c0_141, %c0_142] : memref<1x16xf32, #tpu.memory_space<vmem>>, vector<1x16xf32>
    %482 = vector.broadcast %481 : vector<1x16xf32> to vector<16x16xf32>
    %483 = arith.addf %480, %482 : vector<16x16xf32>
    %c0_143 = arith.constant 0 : index
    %c0_144 = arith.constant 0 : index
    %484 = vector.load %arg7[%c0_143, %c0_144] : memref<16x16xf32, #tpu.memory_space<vmem>>, vector<16x16xf32>
    tpu.vector_store %arg7[%c0_143, %c0_144], %483 {strides = array<i32>} : memref<16x16xf32, #tpu.memory_space<vmem>>, vector<16x16xf32>,
    return
  }
}

</mosaic_0001>

<llo_original>
// kernel: tpu_custom_call.1
$region0: #{tpu_custom_call.1}
  #allocation0 [shape = 'u32[]', space=smem, size = 0x4, offset = 0x4, fixed_abs, tag = 'smem constant byte address 0x4 - core index']
  #allocation1 [shape = 'u32[144,128]{1,0:T(1,128)}', space=vmem, size = 0x12000, scoped, tag = 'internal scratch']
  #allocation2 [shape = 'f32[16,256]{1,0:T(8,128)}', space=vmem, size = 0x4000, scoped, tag = 'scratch operand']
  #allocation3 [shape = 'f32[16,32]{1,0:T(8,128)}', space=vmem, size = 0x2000, scoped, tag = 'scratch operand']
  #allocation4 [shape = 'f32[16,32]{1,0:T(8,128)}', space=vmem, size = 0x2000, scoped, tag = 'scratch operand']
  %s0 = inlined_call_operand.vmem [shape: f32[16,32], index: 0, kind: input, shape index: {}]
  %s1 = inlined_call_operand.vmem [shape: f32[32,256], index: 1, kind: input, shape index: {}]
  %s2 = inlined_call_operand.vmem [shape: f32[1,256], index: 2, kind: input, shape index: {}]
  %s3 = inlined_call_operand.hbm [shape: f32[32,128], index: 3, kind: input, shape index: {}]
  %s4 = inlined_call_operand.hbm [shape: f32[32,128], index: 4, kind: input, shape index: {}]
  %s5 = inlined_call_operand.vmem [shape: f32[64,16], index: 5, kind: input, shape index: {}]
  %s6 = inlined_call_operand.vmem [shape: f32[1,16], index: 6, kind: input, shape index: {}]
  %s7 = inlined_call_operand.hbm [shape: f32[16,16], index: 7, kind: output, shape index: {}]
  %s8 = sld [smem:[#allocation0]]
  $region46: #{tpu_custom_call.1} parent=0
    _
  %s10 = ssub.s32 1, %s8
  %s11 = scalar_select 0, %s10, %s8
  $region1: #{tpu_custom_call.1} parent=0
    #allocation5 [shape = 'u8[16384]{0}', space=vmem, size = 0x4000, scoped, tag = 'input window, operand 3, single buffered']
    #allocation6 [shape = 's32[1]{0}', space=sflag, size = 0x4, scoped, tag = 'scoped memory for tpu_custom_call.1']
    #allocation7 [shape = 's32[1]{0}', space=sflag, size = 0x4, scoped, tag = 'scoped memory for tpu_custom_call.1']
    #allocation8 [shape = 'u8[16384]{0}', space=vmem, size = 0x4000, scoped, tag = 'input window, operand 4, single buffered']
    #allocation9 [shape = 's32[1]{0}', space=sflag, size = 0x4, scoped, tag = 'scoped memory for tpu_custom_call.1']
    #allocation10 [shape = 'u8[8192]{0}', space=vmem, size = 0x2000, scoped, tag = 'output window, operand 0, single buffered']
    %12 = vsyncpa [#allocation6], 0
    %13 = vsyncpa [#allocation9], 0
    %14 = vsyncpa [#allocation7], 0
    // Predicated region
    $region2: #{tpu_custom_call.1} parent=1 // pred_check
      _
    $region3: #{tpu_custom_call.1} parent=1 // pred_check_branch
      %16 = sbr.rel (0) target = $region5
    $region4: #{tpu_custom_call.1} parent=1 // pred_region
      _
    $region5: #{tpu_custom_call.1} parent=1 // pred_fallthru
      _
    // Predicated region
    $region6: #{tpu_custom_call.1} parent=1 // pred_check
      _
    $region7: #{tpu_custom_call.1} parent=1 // pred_check_branch
      %18 = sbr.rel (0) target = $region9
    $region8: #{tpu_custom_call.1} parent=1 // pred_region
      _
    $region9: #{tpu_custom_call.1} parent=1 // pred_fallthru
      _
    // Predicated region
    $region10: #{tpu_custom_call.1} parent=1 // pred_check
      _
    $region11: #{tpu_custom_call.1} parent=1 // pred_check_branch
      %20 = sbr.rel (0) target = $region13
    $region12: #{tpu_custom_call.1} parent=1 // pred_region
      _
    $region13: #{tpu_custom_call.1} parent=1 // pred_fallthru
      _
    // Predicated region
    $region14: #{tpu_custom_call.1} parent=1 // pred_check
      _
    $region15: #{tpu_custom_call.1} parent=1 // pred_check_branch
      %22 = sbr.rel (0) target = $region17
    $region16: #{tpu_custom_call.1} parent=1 // pred_region
      %s24 = ssub.s32 512, 512
      %25 = vsyncadd [#allocation6], %s24
      %s26 = sshll.u32 [#allocation5], 4
      %s27 = int_to_ptr.vmem [resolvable:$true] %s26
      %32 = dma.hbm_to_vmem [thread:$0]  %s3, 512, %s27, [#allocation6], 128, 128, 8
    $region17: #{tpu_custom_call.1} parent=1 // pred_fallthru
      _
    // Predicated region
    $region18: #{tpu_custom_call.1} parent=1 // pred_check
      _
    $region19: #{tpu_custom_call.1} parent=1 // pred_check_branch
      %34 = sbr.rel (0) target = $region21
    $region20: #{tpu_custom_call.1} parent=1 // pred_region
      %s36 = ssub.s32 512, 512
      %37 = vsyncadd [#allocation9], %s36
      %s38 = sshll.u32 [#allocation8], 4
      %s39 = int_to_ptr.vmem [resolvable:$true] %s38
      %44 = dma.hbm_to_vmem [thread:$0]  %s4, 512, %s39, [#allocation9], 128, 128, 8
    $region21: #{tpu_custom_call.1} parent=1 // pred_fallthru
      _
    // Predicated region
    $region22: #{tpu_custom_call.1} parent=1 // pred_check
      _
    $region23: #{tpu_custom_call.1} parent=1 // pred_check_branch
      %46 = sbr.rel (0) target = $region25
    $region24: #{tpu_custom_call.1} parent=1 // pred_region
      _
    $region25: #{tpu_custom_call.1} parent=1 // pred_fallthru
      _
    // Predicated region
    $region26: #{tpu_custom_call.1} parent=1 // pred_check
      _
    $region27: #{tpu_custom_call.1} parent=1 // pred_check_branch
      %48 = sbr.rel (0) target = $region29
    $region28: #{tpu_custom_call.1} parent=1 // pred_region
      _
    $region29: #{tpu_custom_call.1} parent=1 // pred_fallthru
      _
    // Predicated region
    $region30: #{tpu_custom_call.1} parent=1 // pred_check
      _
    $region31: #{tpu_custom_call.1} parent=1 // pred_check_branch
      %50 = sbr.rel (0) target = $region33
    $region32: #{tpu_custom_call.1} parent=1 // pred_region
      %51 = dma.done [#allocation6], 512
    $region33: #{tpu_custom_call.1} parent=1 // pred_fallthru
      _
    // Predicated region
    $region34: #{tpu_custom_call.1} parent=1 // pred_check
      _
    $region35: #{tpu_custom_call.1} parent=1 // pred_check_branch
      %53 = sbr.rel (0) target = $region37
    $region36: #{tpu_custom_call.1} parent=1 // pred_region
      %54 = dma.done [#allocation9], 512
    $region37: #{tpu_custom_call.1} parent=1 // pred_fallthru
      _
    %v55 = vld [vmem:[%s0] sm:$0xff]
    %v56 = vld [vmem:[%s0 + $0x8] sm:$0xff]
    %v57 = vld [vmem:[%s1] sm:$0xff]
    %v58 = vld [vmem:[%s1 + $0x8] sm:$0xff]
    %v59 = vld [vmem:[%s1 + $0x10] sm:$0xff]
    %v60 = vld [vmem:[%s1 + $0x18] sm:$0xff]
    %v61 = vld [vmem:[%s1 + $0x20] sm:$0xff]
    %v62 = vld [vmem:[%s1 + $0x28] sm:$0xff]
    %v63 = vld [vmem:[%s1 + $0x30] sm:$0xff]
    %v64 = vld [vmem:[%s1 + $0x38] sm:$0xff]
    %v65 = vld [vmem:[%s2] sm:$0x3]
    %v67 = vlaneseq
    %v68 = vshrl.u32 %v67, 7
    %v69 = vsub.s32 0, %v68
    %v70 = vrot.slane %v65, %v69
    %v71 = vlaneseq
    %v72 = vshrl.u32 %v71, 7
    %v73 = vsub.s32 1, %v72
    %v74 = vrot.slane %v65, %v73
    %vm77 = vcmask 261120
    %v79 = vsel %vm77, %v55, 0
    %v82 = vsel %vm77, %v56, 0
    %84 = vmatprep.subr.mxu0 %v58
    %85 = vmatpush1.msra.mxu0 %v57
    %86 = vmatprep.subr.mxu0 %v60
    %87 = vmatpush1.msra.mxu0 %v59
    %88 = vmatprep.subr.mxu0 %v62
    %89 = vmatpush1.msra.mxu0 %v61
    %90 = vmatprep.subr.mxu0 %v64
    %91 = vmatpush1.msra.mxu0 %v63
    %92 = vmatprep.subr.mxu0 0.0
    %93 = vmatpush1.msra.mxu0 0.0
    %94 = vmatprep.subr.mxu0 0.0
    %95 = vmatpush1.msra.mxu0 0.0
    %96 = vmatprep.subr.mxu0 0.0
    %97 = vmatpush1.msra.mxu0 0.0
    %98 = vmatprep.subr.mxu0 0.0
    %99 = vmatpush1.msra.mxu0 0.0
    %100 = vmatprep.subr.mxu0 0.0
    %101 = vmatpush1.msra.mxu0 0.0
    %102 = vmatprep.subr.mxu0 0.0
    %103 = vmatpush1.msra.mxu0 0.0
    %104 = vmatprep.subr.mxu0 0.0
    %105 = vmatpush1.msra.mxu0 0.0
    %106 = vmatprep.subr.mxu0 0.0
    %107 = vmatpush1.msra.mxu0 0.0
    %108 = vmatprep.subr.mxu0 0.0
    %109 = vmatpush1.msra.mxu0 0.0
    %110 = vmatprep.subr.mxu0 0.0
    %111 = vmatpush1.msra.mxu0 0.0
    %112 = vmatprep.subr.mxu0 0.0
    %113 = vmatpush1.msra.mxu0 0.0
    %114 = vmatprep.subr.mxu0 0.0
    %115 = vmatpush1.msra.mxu0 0.0
    %116 = vmatprep.subr.mxu0 0.0
    %117 = vmatpush1.msra.mxu0 0.0
    %118 = vmatprep.subr.mxu0 0.0
    %119 = vmatpush1.msra.mxu0 0.0
    %120 = vmatprep.subr.mxu0 0.0
    %121 = vmatpush1.msra.mxu0 0.0
    %122 = vmatprep.subr.mxu0 0.0
    %123 = vmatpush1.msra.mxu0 0.0
    %124 = vmatprep.subr.mxu0 0.0
    %125 = vmatpush1.msra.mxu0 0.0
    %126 = vmatprep.subr.mxu0 0.0
    %127 = vmatpush1.msra.mxu0 0.0
    %128 = vmatprep.subr.mxu0 0.0
    %129 = vmatpush1.msra.mxu0 0.0
    %130 = vmatprep.subr.mxu0 0.0
    %131 = vmatpush1.msra.mxu0 0.0
    %132 = vmatprep.subr.mxu0 0.0
    %133 = vmatpush1.msra.mxu0 0.0
    %134 = vmatprep.subr.mxu0 0.0
    %135 = vmatpush1.msra.mxu0 0.0
    %136 = vmatprep.subr.mxu0 0.0
    %137 = vmatpush1.msra.mxu0 0.0
    %138 = vmatprep.subr.mxu0 0.0
    %139 = vmatpush1.msra.mxu0 0.0
    %140 = vmatprep.subr.mxu0 0.0
    %141 = vmatpush1.msra.mxu0 0.0
    %142 = vmatprep.subr.mxu0 0.0
    %143 = vmatpush1.msra.mxu0 0.0
    %144 = vmatprep.subr.mxu0 0.0
    %145 = vmatpush1.msra.mxu0 0.0
    %146 = vmatprep.subr.mxu0 0.0
    %147 = vmatpush1.msra.mxu0 0.0
    %148 = vmatprep.mubr.f32.mxu0 0.0
    %149 = vmatmul.mubr.f32.gmra.mrb[0].mxu0 %v79
    %v150 = vpop.f32.mrb[0].mxu0
    %v151 = vadd.f32 %v70, %v150
    %v152 = vpop.f32.mrb[0].mxu0
    %v153 = vadd.f32 %v74, %v152
    %154 = vmatprep.mubr.f32.mxu0 0.0
    %155 = vmatmul.mubr.f32.gmra.mrb[0].mxu0 %v82
    %v156 = vpop.f32.mrb[0].mxu0
    %v157 = vadd.f32 %v70, %v156
    %v158 = vpop.f32.mrb[0].mxu0
    %v159 = vadd.f32 %v74, %v158
    %160 = vdwg.mxu0
    %161 = vst [vmem:[#allocation2] sm:$0xff] %v151
    %162 = vst [vmem:[#allocation2 + $0x8] sm:$0xff] %v153
    %163 = vst [vmem:[#allocation2 + $0x10] sm:$0xff] %v157
    %164 = vst [vmem:[#allocation2 + $0x18] sm:$0xff] %v159
    %v165 = vld [vmem:[#allocation5] sm:$0xff]
    %v166 = vld [vmem:[#allocation5 + $0x8] sm:$0xff]
    %v167 = vld [vmem:[#allocation5 + $0x10] sm:$0xff]
    %v168 = vld [vmem:[#allocation5 + $0x18] sm:$0xff]
    %v169 = vld [vmem:[#allocation8] sm:$0xff]
    %v170 = vld [vmem:[#allocation8 + $0x8] sm:$0xff]
    %v171 = vld [vmem:[#allocation8 + $0x10] sm:$0xff]
    %v172 = vld [vmem:[#allocation8 + $0x18] sm:$0xff]
    %v173 = vld [vmem:[#allocation2] sm:$0x3]
    %v175 = vsel %vm77, 0.0, 0
    %177 = vmatprep.subr.mxu0 0.0
    %178 = vmatpush1.msra.mxu0 %v165
    %179 = vmatprep.subr.mxu0 0.0
    %180 = vmatpush1.msra.mxu0 %v166
    %181 = vmatprep.subr.mxu0 0.0
    %182 = vmatpush1.msra.mxu0 %v167
    %183 = vmatprep.subr.mxu0 0.0
    %184 = vmatpush1.msra.mxu0 %v168
    %185 = vmatprep.subr.mxu0 0.0
    %186 = vmatpush1.msra.mxu0 0.0
    %187 = vmatprep.subr.mxu0 0.0
    %188 = vmatpush1.msra.mxu0 0.0
    %189 = vmatprep.subr.mxu0 0.0
    %190 = vmatpush1.msra.mxu0 0.0
    %191 = vmatprep.subr.mxu0 0.0
    %192 = vmatpush1.msra.mxu0 0.0
    %193 = vmatprep.subr.mxu0 0.0
    %194 = vmatpush1.msra.mxu0 0.0
    %195 = vmatprep.subr.mxu0 0.0
    %196 = vmatpush1.msra.mxu0 0.0
    %197 = vmatprep.subr.mxu0 0.0
    %198 = vmatpush1.msra.mxu0 0.0
    %199 = vmatprep.subr.mxu0 0.0
    %200 = vmatpush1.msra.mxu0 0.0
    %201 = vmatprep.subr.mxu0 0.0
    %202 = vmatpush1.msra.mxu0 0.0
    %203 = vmatprep.subr.mxu0 0.0
    %204 = vmatpush1.msra.mxu0 0.0
    %205 = vmatprep.subr.mxu0 0.0
    %206 = vmatpush1.msra.mxu0 0.0
    %207 = vmatprep.subr.mxu0 0.0
    %208 = vmatpush1.msra.mxu0 0.0
    %209 = vmatprep.subr.mxu0 0.0
    %210 = vmatpush1.msra.mxu0 0.0
    %211 = vmatprep.subr.mxu0 0.0
    %212 = vmatpush1.msra.mxu0 0.0
    %213 = vmatprep.subr.mxu0 0.0
    %214 = vmatpush1.msra.mxu0 0.0
    %215 = vmatprep.subr.mxu0 0.0
    %216 = vmatpush1.msra.mxu0 0.0
    %217 = vmatprep.subr.mxu0 0.0
    %218 = vmatpush1.msra.mxu0 0.0
    %219 = vmatprep.subr.mxu0 0.0
    %220 = vmatpush1.msra.mxu0 0.0
    %221 = vmatprep.subr.mxu0 0.0
    %222 = vmatpush1.msra.mxu0 0.0
    %223 = vmatprep.subr.mxu0 0.0
    %224 = vmatpush1.msra.mxu0 0.0
    %225 = vmatprep.subr.mxu0 0.0
    %226 = vmatpush1.msra.mxu0 0.0
    %227 = vmatprep.subr.mxu0 0.0
    %228 = vmatpush1.msra.mxu0 0.0
    %229 = vmatprep.subr.mxu0 0.0
    %230 = vmatpush1.msra.mxu0 0.0
    %231 = vmatprep.subr.mxu0 0.0
    %232 = vmatpush1.msra.mxu0 0.0
    %233 = vmatprep.subr.mxu0 0.0
    %234 = vmatpush1.msra.mxu0 0.0
    %235 = vmatprep.subr.mxu0 0.0
    %236 = vmatpush1.msra.mxu0 0.0
    %237 = vmatprep.subr.mxu0 0.0
    %238 = vmatpush1.msra.mxu0 0.0
    %239 = vmatprep.subr.mxu0 0.0
    %240 = vmatpush1.msra.mxu0 0.0
    %241 = vmatprep.mubr.f32.mxu0 0.0
    %242 = vmatmul.mubr.f32.gmra.mrb[0].mxu0 %v175
    %v243 = vpop.f32.mrb[0].mxu0
    %v244 = vadd.f32 0.0, %v243
    %v245 = vpop.f32.mrb[0].mxu0
    %246 = vdwg.mxu0
    %v247 = vadd.f32 %v173, %v244
    %v248 = vld [vmem:[#allocation2 + $0x18] sm:$0xc0]
    %249 = vmatprep.subr.mxu0 0.0
    %250 = vmatpush1.msra.mxu0 %v169
    %251 = vmatprep.subr.mxu0 0.0
    %252 = vmatpush1.msra.mxu0 %v170
    %253 = vmatprep.subr.mxu0 0.0
    %254 = vmatpush1.msra.mxu0 %v171
    %255 = vmatprep.subr.mxu0 0.0
    %256 = vmatpush1.msra.mxu0 %v172
    %257 = vmatprep.subr.mxu0 0.0
    %258 = vmatpush1.msra.mxu0 0.0
    %259 = vmatprep.subr.mxu0 0.0
    %260 = vmatpush1.msra.mxu0 0.0
    %261 = vmatprep.subr.mxu0 0.0
    %262 = vmatpush1.msra.mxu0 0.0
    %263 = vmatprep.subr.mxu0 0.0
    %264 = vmatpush1.msra.mxu0 0.0
    %265 = vmatprep.subr.mxu0 0.0
    %266 = vmatpush1.msra.mxu0 0.0
    %267 = vmatprep.subr.mxu0 0.0
    %268 = vmatpush1.msra.mxu0 0.0
    %269 = vmatprep.subr.mxu0 0.0
    %270 = vmatpush1.msra.mxu0 0.0
    %271 = vmatprep.subr.mxu0 0.0
    %272 = vmatpush1.msra.mxu0 0.0
    %273 = vmatprep.subr.mxu0 0.0
    %274 = vmatpush1.msra.mxu0 0.0
    %275 = vmatprep.subr.mxu0 0.0
    %276 = vmatpush1.msra.mxu0 0.0
    %277 = vmatprep.subr.mxu0 0.0
    %278 = vmatpush1.msra.mxu0 0.0
    %279 = vmatprep.subr.mxu0 0.0
    %280 = vmatpush1.msra.mxu0 0.0
    %281 = vmatprep.subr.mxu0 0.0
    %282 = vmatpush1.msra.mxu0 0.0
    %283 = vmatprep.subr.mxu0 0.0
    %284 = vmatpush1.msra.mxu0 0.0
    %285 = vmatprep.subr.mxu0 0.0
    %286 = vmatpush1.msra.mxu0 0.0
    %287 = vmatprep.subr.mxu0 0.0
    %288 = vmatpush1.msra.mxu0 0.0
    %289 = vmatprep.subr.mxu0 0.0
    %290 = vmatpush1.msra.mxu0 0.0
    %291 = vmatprep.subr.mxu0 0.0
    %292 = vmatpush1.msra.mxu0 0.0
    %293 = vmatprep.subr.mxu0 0.0
    %294 = vmatpush1.msra.mxu0 0.0
    %295 = vmatprep.subr.mxu0 0.0
    %296 = vmatpush1.msra.mxu0 0.0
    %297 = vmatprep.subr.mxu0 0.0
    %298 = vmatpush1.msra.mxu0 0.0
    %299 = vmatprep.subr.mxu0 0.0
    %300 = vmatpush1.msra.mxu0 0.0
    %301 = vmatprep.subr.mxu0 0.0
    %302 = vmatpush1.msra.mxu0 0.0
    %303 = vmatprep.subr.mxu0 0.0
    %304 = vmatpush1.msra.mxu0 0.0
    %305 = vmatprep.subr.mxu0 0.0
    %306 = vmatpush1.msra.mxu0 0.0
    %307 = vmatprep.subr.mxu0 0.0
    %308 = vmatpush1.msra.mxu0 0.0
    %309 = vmatprep.subr.mxu0 0.0
    %310 = vmatpush1.msra.mxu0 0.0
    %311 = vmatprep.subr.mxu0 0.0
    %312 = vmatpush1.msra.mxu0 0.0
    %313 = vmatprep.mubr.f32.mxu0 0.0
    %314 = vmatmul.mubr.f32.gmra.mrb[0].mxu0 %v175
    %v315 = vpop.f32.mrb[0].mxu0
    %v316 = vadd.f32 0.0, %v315
    %v317 = vpop.f32.mrb[0].mxu0
    %318 = vdwg.mxu0
    %v320 = vrot.slane %v316, 2
    %v322 = vadd.f32 %v248, %v320
    %v323 = vxor.u32 %v247, 2147483648
    %v324 = vmul.f32 %v323, 1.442695
    %v325 = vpow.pop %v324
    %v326 = vadd.f32 %v325, 1.0
    %v327 = vrcp.pop %v326
    %v328 = vmul.f32 1.0, %v327
    %v329 = vtanh.pop %v247
    %v330 = vmul.f32 %v328, 0.0
    %332 = vrot.lane.b32.xlu0 %v329, 64
    %v333 = vpop.permute.xlu0 %332
    %v335 = vmul.f32 %v328, %v333
    %337 = vrot.lane.b32.xlu0 %v335, 32
    %v338 = vpop.permute.xlu0 %337
    %v340 = vadd.f32 %v330, %v338
    %v341 = vtanh.pop %v340
    %343 = vrot.lane.b32.xlu0 %v341, 64
    %v344 = vpop.permute.xlu0 %343
    %v346 = vmul.f32 %v328, %v344
    %v347 = vxor.u32 %v322, 2147483648
    %v348 = vmul.f32 %v347, 1.442695
    %v349 = vpow.pop %v348
    %v350 = vadd.f32 %v349, 1.0
    %v351 = vrcp.pop %v350
    %v352 = vmul.f32 1.0, %v351
    %v353 = vtanh.pop %v322
    %v354 = vmul.f32 %v352, 0.0
    %356 = vrot.lane.b32.xlu0 %v353, 64
    %v357 = vpop.permute.xlu0 %356
    %v359 = vmul.f32 %v352, %v357
    %361 = vrot.lane.b32.xlu0 %v359, 32
    %v362 = vpop.permute.xlu0 %361
    %v364 = vadd.f32 %v354, %v362
    %v365 = vtanh.pop %v364
    %367 = vrot.lane.b32.xlu0 %v365, 64
    %v368 = vpop.permute.xlu0 %367
    %v370 = vmul.f32 %v352, %v368
    %372 = vrot.lane.b32.xlu0 %v346, 32
    %v373 = vpop.permute.xlu0 %372
    %vm375 = vcmask 254976
    %376 = vst.msk [vmem:[#allocation3] sm:$0x3] %vm375, %v373
    %378 = vrot.lane.b32.xlu0 %v370, 32
    %v379 = vpop.permute.xlu0 %378
    %vm381 = vcmask 261126
    %382 = vst.msk [vmem:[#allocation4 + $0x8] sm:$0xc0] %vm381, %v379
    %v383 = vld [vmem:[#allocation2] sm:$0xc]
    %v384 = vsel %vm77, %v373, 0
    %386 = vmatprep.subr.mxu0 0.0
    %387 = vmatpush1.msra.mxu0 %v165
    %388 = vmatprep.subr.mxu0 0.0
    %389 = vmatpush1.msra.mxu0 %v166
    %390 = vmatprep.subr.mxu0 0.0
    %391 = vmatpush1.msra.mxu0 %v167
    %392 = vmatprep.subr.mxu0 0.0
    %393 = vmatpush1.msra.mxu0 %v168
    %394 = vmatprep.subr.mxu0 0.0
    %395 = vmatpush1.msra.mxu0 0.0
    %396 = vmatprep.subr.mxu0 0.0
    %397 = vmatpush1.msra.mxu0 0.0
    %398 = vmatprep.subr.mxu0 0.0
    %399 = vmatpush1.msra.mxu0 0.0
    %400 = vmatprep.subr.mxu0 0.0
    %401 = vmatpush1.msra.mxu0 0.0
    %402 = vmatprep.subr.mxu0 0.0
    %403 = vmatpush1.msra.mxu0 0.0
    %404 = vmatprep.subr.mxu0 0.0
    %405 = vmatpush1.msra.mxu0 0.0
    %406 = vmatprep.subr.mxu0 0.0
    %407 = vmatpush1.msra.mxu0 0.0
    %408 = vmatprep.subr.mxu0 0.0
    %409 = vmatpush1.msra.mxu0 0.0
    %410 = vmatprep.subr.mxu0 0.0
    %411 = vmatpush1.msra.mxu0 0.0
    %412 = vmatprep.subr.mxu0 0.0
    %413 = vmatpush1.msra.mxu0 0.0
    %414 = vmatprep.subr.mxu0 0.0
    %415 = vmatpush1.msra.mxu0 0.0
    %416 = vmatprep.subr.mxu0 0.0
    %417 = vmatpush1.msra.mxu0 0.0
    %418 = vmatprep.subr.mxu0 0.0
    %419 = vmatpush1.msra.mxu0 0.0
    %420 = vmatprep.subr.mxu0 0.0
    %421 = vmatpush1.msra.mxu0 0.0
    %422 = vmatprep.subr.mxu0 0.0
    %423 = vmatpush1.msra.mxu0 0.0
    %424 = vmatprep.subr.mxu0 0.0
    %425 = vmatpush1.msra.mxu0 0.0
    %426 = vmatprep.subr.mxu0 0.0
    %427 = vmatpush1.msra.mxu0 0.0
    %428 = vmatprep.subr.mxu0 0.0
    %429 = vmatpush1.msra.mxu0 0.0
    %430 = vmatprep.subr.mxu0 0.0
    %431 = vmatpush1.msra.mxu0 0.0
    %432 = vmatprep.subr.mxu0 0.0
    %433 = vmatpush1.msra.mxu0 0.0
    %434 = vmatprep.subr.mxu0 0.0
    %435 = vmatpush1.msra.mxu0 0.0
    %436 = vmatprep.subr.mxu0 0.0
    %437 = vmatpush1.msra.mxu0 0.0
    %438 = vmatprep.subr.mxu0 0.0
    %439 = vmatpush1.msra.mxu0 0.0
    %440 = vmatprep.subr.mxu0 0.0
    %441 = vmatpush1.msra.mxu0 0.0
    %442 = vmatprep.subr.mxu0 0.0
    %443 = vmatpush1.msra.mxu0 0.0
    %444 = vmatprep.subr.mxu0 0.0
    %445 = vmatpush1.msra.mxu0 0.0
    %446 = vmatprep.subr.mxu0 0.0
    %447 = vmatpush1.msra.mxu0 0.0
    %448 = vmatprep.subr.mxu0 0.0
    %449 = vmatpush1.msra.mxu0 0.0
    %450 = vmatprep.mubr.f32.mxu0 0.0
    %451 = vmatmul.mubr.f32.gmra.mrb[0].mxu0 %v384
    %v452 = vpop.f32.mrb[0].mxu0
    %v453 = vadd.f32 0.0, %v452
    %v454 = vpop.f32.mrb[0].mxu0
    %455 = vdwg.mxu0
    %v457 = vrot.slane %v453, 6
    %v459 = vadd.f32 %v383, %v457
    %v460 = vld [vmem:[#allocation2 + $0x18] sm:$0x30]
    %v461 = vrot.slane %v370, 6
    %462 = vrot.lane.b32.xlu0 %v461, 32
    %v463 = vpop.permute.xlu0 %462
    %v464 = vsel %vm77, %v463, 0
    %466 = vmatprep.subr.mxu0 0.0
    %467 = vmatpush1.msra.mxu0 %v169
    %468 = vmatprep.subr.mxu0 0.0
    %469 = vmatpush1.msra.mxu0 %v170
    %470 = vmatprep.subr.mxu0 0.0
    %471 = vmatpush1.msra.mxu0 %v171
    %472 = vmatprep.subr.mxu0 0.0
    %473 = vmatpush1.msra.mxu0 %v172
    %474 = vmatprep.subr.mxu0 0.0
    %475 = vmatpush1.msra.mxu0 0.0
    %476 = vmatprep.subr.mxu0 0.0
    %477 = vmatpush1.msra.mxu0 0.0
    %478 = vmatprep.subr.mxu0 0.0
    %479 = vmatpush1.msra.mxu0 0.0
    %480 = vmatprep.subr.mxu0 0.0
    %481 = vmatpush1.msra.mxu0 0.0
    %482 = vmatprep.subr.mxu0 0.0
    %483 = vmatpush1.msra.mxu0 0.0
    %484 = vmatprep.subr.mxu0 0.0
    %485 = vmatpush1.msra.mxu0 0.0
    %486 = vmatprep.subr.mxu0 0.0
    %487 = vmatpush1.msra.mxu0 0.0
    %488 = vmatprep.subr.mxu0 0.0
    %489 = vmatpush1.msra.mxu0 0.0
    %490 = vmatprep.subr.mxu0 0.0
    %491 = vmatpush1.msra.mxu0 0.0
    %492 = vmatprep.subr.mxu0 0.0
    %493 = vmatpush1.msra.mxu0 0.0
    %494 = vmatprep.subr.mxu0 0.0
    %495 = vmatpush1.msra.mxu0 0.0
    %496 = vmatprep.subr.mxu0 0.0
    %497 = vmatpush1.msra.mxu0 0.0
    %498 = vmatprep.subr.mxu0 0.0
    %499 = vmatpush1.msra.mxu0 0.0
    %500 = vmatprep.subr.mxu0 0.0
    %501 = vmatpush1.msra.mxu0 0.0
    %502 = vmatprep.subr.mxu0 0.0
    %503 = vmatpush1.msra.mxu0 0.0
    %504 = vmatprep.subr.mxu0 0.0
    %505 = vmatpush1.msra.mxu0 0.0
    %506 = vmatprep.subr.mxu0 0.0
    %507 = vmatpush1.msra.mxu0 0.0
    %508 = vmatprep.subr.mxu0 0.0
    %509 = vmatpush1.msra.mxu0 0.0
    %510 = vmatprep.subr.mxu0 0.0
    %511 = vmatpush1.msra.mxu0 0.0
    %512 = vmatprep.subr.mxu0 0.0
    %513 = vmatpush1.msra.mxu0 0.0
    %514 = vmatprep.subr.mxu0 0.0
    %515 = vmatpush1.msra.mxu0 0.0
    %516 = vmatprep.subr.mxu0 0.0
    %517 = vmatpush1.msra.mxu0 0.0
    %518 = vmatprep.subr.mxu0 0.0
    %519 = vmatpush1.msra.mxu0 0.0
    %520 = vmatprep.subr.mxu0 0.0
    %521 = vmatpush1.msra.mxu0 0.0
    %522 = vmatprep.subr.mxu0 0.0
    %523 = vmatpush1.msra.mxu0 0.0
    %524 = vmatprep.subr.mxu0 0.0
    %525 = vmatpush1.msra.mxu0 0.0
    %526 = vmatprep.subr.mxu0 0.0
    %527 = vmatpush1.msra.mxu0 0.0
    %528 = vmatprep.subr.mxu0 0.0
    %529 = vmatpush1.msra.mxu0 0.0
    %530 = vmatprep.mubr.f32.mxu0 0.0
    %531 = vmatmul.mubr.f32.gmra.mrb[0].mxu0 %v464
    %v532 = vpop.f32.mrb[0].mxu0
    %v533 = vadd.f32 0.0, %v532
    %v534 = vpop.f32.mrb[0].mxu0
    %535 = vdwg.mxu0
    %v537 = vrot.slane %v533, 4
    %v539 = vadd.f32 %v460, %v537
    %v540 = vxor.u32 %v459, 2147483648
    %v541 = vmul.f32 %v540, 1.442695
    %v542 = vpow.pop %v541
    %v543 = vadd.f32 %v542, 1.0
    %v544 = vrcp.pop %v543
    %v545 = vmul.f32 1.0, %v544
    %v546 = vtanh.pop %v459
    %v548 = vrot.slane %v340, 6
    %v550 = vmul.f32 %v545, %v548
    %552 = vrot.lane.b32.xlu0 %v546, 64
    %v553 = vpop.permute.xlu0 %552
    %v555 = vmul.f32 %v545, %v553
    %557 = vrot.lane.b32.xlu0 %v555, 32
    %v558 = vpop.permute.xlu0 %557
    %v560 = vadd.f32 %v550, %v558
    %v561 = vtanh.pop %v560
    %563 = vrot.lane.b32.xlu0 %v561, 64
    %v564 = vpop.permute.xlu0 %563
    %v566 = vmul.f32 %v545, %v564
    %v567 = vxor.u32 %v539, 2147483648
    %v568 = vmul.f32 %v567, 1.442695
    %v569 = vpow.pop %v568
    %v570 = vadd.f32 %v569, 1.0
    %v571 = vrcp.pop %v570
    %v572 = vmul.f32 1.0, %v571
    %v573 = vtanh.pop %v539
    %v575 = vrot.slane %v364, 2
    %v577 = vmul.f32 %v572, %v575
    %579 = vrot.lane.b32.xlu0 %v573, 64
    %v580 = vpop.permute.xlu0 %579
    %v582 = vmul.f32 %v572, %v580
    %584 = vrot.lane.b32.xlu0 %v582, 32
    %v585 = vpop.permute.xlu0 %584
    %v587 = vadd.f32 %v577, %v585
    %v588 = vtanh.pop %v587
    %590 = vrot.lane.b32.xlu0 %v588, 64
    %v591 = vpop.permute.xlu0 %590
    %v593 = vmul.f32 %v572, %v591
    %595 = vrot.lane.b32.xlu0 %v566, 32
    %v596 = vpop.permute.xlu0 %595
    %vm598 = vcmask 257026
    %599 = vst.msk [vmem:[#allocation3] sm:$0xc] %vm598, %v596
    %601 = vrot.lane.b32.xlu0 %v593, 32
    %v602 = vpop.permute.xlu0 %601
    %vm604 = vcmask 259076
    %605 = vst.msk [vmem:[#allocation4 + $0x8] sm:$0x30] %vm604, %v602
    %v606 = vld [vmem:[#allocation2] sm:$0x30]
    %v607 = vrot.slane %v566, 2
    %608 = vrot.lane.b32.xlu0 %v607, 32
    %v609 = vpop.permute.xlu0 %608
    %v610 = vsel %vm77, %v609, 0
    %612 = vmatprep.subr.mxu0 0.0
    %613 = vmatpush1.msra.mxu0 %v165
    %614 = vmatprep.subr.mxu0 0.0
    %615 = vmatpush1.msra.mxu0 %v166
    %616 = vmatprep.subr.mxu0 0.0
    %617 = vmatpush1.msra.mxu0 %v167
    %618 = vmatprep.subr.mxu0 0.0
    %619 = vmatpush1.msra.mxu0 %v168
    %620 = vmatprep.subr.mxu0 0.0
    %621 = vmatpush1.msra.mxu0 0.0
    %622 = vmatprep.subr.mxu0 0.0
    %623 = vmatpush1.msra.mxu0 0.0
    %624 = vmatprep.subr.mxu0 0.0
    %625 = vmatpush1.msra.mxu0 0.0
    %626 = vmatprep.subr.mxu0 0.0
    %627 = vmatpush1.msra.mxu0 0.0
    %628 = vmatprep.subr.mxu0 0.0
    %629 = vmatpush1.msra.mxu0 0.0
    %630 = vmatprep.subr.mxu0 0.0
    %631 = vmatpush1.msra.mxu0 0.0
    %632 = vmatprep.subr.mxu0 0.0
    %633 = vmatpush1.msra.mxu0 0.0
    %634 = vmatprep.subr.mxu0 0.0
    %635 = vmatpush1.msra.mxu0 0.0
    %636 = vmatprep.subr.mxu0 0.0
    %637 = vmatpush1.msra.mxu0 0.0
    %638 = vmatprep.subr.mxu0 0.0
    %639 = vmatpush1.msra.mxu0 0.0
    %640 = vmatprep.subr.mxu0 0.0
    %641 = vmatpush1.msra.mxu0 0.0
    %642 = vmatprep.subr.mxu0 0.0
    %643 = vmatpush1.msra.mxu0 0.0
    %644 = vmatprep.subr.mxu0 0.0
    %645 = vmatpush1.msra.mxu0 0.0
    %646 = vmatprep.subr.mxu0 0.0
    %647 = vmatpush1.msra.mxu0 0.0
    %648 = vmatprep.subr.mxu0 0.0
    %649 = vmatpush1.msra.mxu0 0.0
    %650 = vmatprep.subr.mxu0 0.0
    %651 = vmatpush1.msra.mxu0 0.0
    %652 = vmatprep.subr.mxu0 0.0
    %653 = vmatpush1.msra.mxu0 0.0
    %654 = vmatprep.subr.mxu0 0.0
    %655 = vmatpush1.msra.mxu0 0.0
    %656 = vmatprep.subr.mxu0 0.0
    %657 = vmatpush1.msra.mxu0 0.0
    %658 = vmatprep.subr.mxu0 0.0
    %659 = vmatpush1.msra.mxu0 0.0
    %660 = vmatprep.subr.mxu0 0.0
    %661 = vmatpush1.msra.mxu0 0.0
    %662 = vmatprep.subr.mxu0 0.0
    %663 = vmatpush1.msra.mxu0 0.0
    %664 = vmatprep.subr.mxu0 0.0
    %665 = vmatpush1.msra.mxu0 0.0
    %666 = vmatprep.subr.mxu0 0.0
    %667 = vmatpush1.msra.mxu0 0.0
    %668 = vmatprep.subr.mxu0 0.0
    %669 = vmatpush1.msra.mxu0 0.0
    %670 = vmatprep.subr.mxu0 0.0
    %671 = vmatpush1.msra.mxu0 0.0
    %672 = vmatprep.subr.mxu0 0.0
    %673 = vmatpush1.msra.mxu0 0.0
    %674 = vmatprep.subr.mxu0 0.0
    %675 = vmatpush1.msra.mxu0 0.0
    %676 = vmatprep.mubr.f32.mxu0 0.0
    %677 = vmatmul.mubr.f32.gmra.mrb[0].mxu0 %v610
    %v678 = vpop.f32.mrb[0].mxu0
    %v679 = vadd.f32 0.0, %v678
    %v680 = vpop.f32.mrb[0].mxu0
    %681 = vdwg.mxu0
    %v683 = vrot.slane %v679, 4
    %v685 = vadd.f32 %v606, %v683
    %v686 = vld [vmem:[#allocation2 + $0x18] sm:$0xc]
    %v687 = vrot.slane %v593, 4
    %688 = vrot.lane.b32.xlu0 %v687, 32
    %v689 = vpop.permute.xlu0 %688
    %v690 = vsel %vm77, %v689, 0
    %692 = vmatprep.subr.mxu0 0.0
    %693 = vmatpush1.msra.mxu0 %v169
    %694 = vmatprep.subr.mxu0 0.0
    %695 = vmatpush1.msra.mxu0 %v170
    %696 = vmatprep.subr.mxu0 0.0
    %697 = vmatpush1.msra.mxu0 %v171
    %698 = vmatprep.subr.mxu0 0.0
    %699 = vmatpush1.msra.mxu0 %v172
    %700 = vmatprep.subr.mxu0 0.0
    %701 = vmatpush1.msra.mxu0 0.0
    %702 = vmatprep.subr.mxu0 0.0
    %703 = vmatpush1.msra.mxu0 0.0
    %704 = vmatprep.subr.mxu0 0.0
    %705 = vmatpush1.msra.mxu0 0.0
    %706 = vmatprep.subr.mxu0 0.0
    %707 = vmatpush1.msra.mxu0 0.0
    %708 = vmatprep.subr.mxu0 0.0
    %709 = vmatpush1.msra.mxu0 0.0
    %710 = vmatprep.subr.mxu0 0.0
    %711 = vmatpush1.msra.mxu0 0.0
    %712 = vmatprep.subr.mxu0 0.0
    %713 = vmatpush1.msra.mxu0 0.0
    %714 = vmatprep.subr.mxu0 0.0
    %715 = vmatpush1.msra.mxu0 0.0
    %716 = vmatprep.subr.mxu0 0.0
    %717 = vmatpush1.msra.mxu0 0.0
    %718 = vmatprep.subr.mxu0 0.0
    %719 = vmatpush1.msra.mxu0 0.0
    %720 = vmatprep.subr.mxu0 0.0
    %721 = vmatpush1.msra.mxu0 0.0
    %722 = vmatprep.subr.mxu0 0.0
    %723 = vmatpush1.msra.mxu0 0.0
    %724 = vmatprep.subr.mxu0 0.0
    %725 = vmatpush1.msra.mxu0 0.0
    %726 = vmatprep.subr.mxu0 0.0
    %727 = vmatpush1.msra.mxu0 0.0
    %728 = vmatprep.subr.mxu0 0.0
    %729 = vmatpush1.msra.mxu0 0.0
    %730 = vmatprep.subr.mxu0 0.0
    %731 = vmatpush1.msra.mxu0 0.0
    %732 = vmatprep.subr.mxu0 0.0
    %733 = vmatpush1.msra.mxu0 0.0
    %734 = vmatprep.subr.mxu0 0.0
    %735 = vmatpush1.msra.mxu0 0.0
    %736 = vmatprep.subr.mxu0 0.0
    %737 = vmatpush1.msra.mxu0 0.0
    %738 = vmatprep.subr.mxu0 0.0
    %739 = vmatpush1.msra.mxu0 0.0
    %740 = vmatprep.subr.mxu0 0.0
    %741 = vmatpush1.msra.mxu0 0.0
    %742 = vmatprep.subr.mxu0 0.0
    %743 = vmatpush1.msra.mxu0 0.0
    %744 = vmatprep.subr.mxu0 0.0
    %745 = vmatpush1.msra.mxu0 0.0
    %746 = vmatprep.subr.mxu0 0.0
    %747 = vmatpush1.msra.mxu0 0.0
    %748 = vmatprep.subr.mxu0 0.0
    %749 = vmatpush1.msra.mxu0 0.0
    %750 = vmatprep.subr.mxu0 0.0
    %751 = vmatpush1.msra.mxu0 0.0
    %752 = vmatprep.subr.mxu0 0.0
    %753 = vmatpush1.msra.mxu0 0.0
    %754 = vmatprep.subr.mxu0 0.0
    %755 = vmatpush1.msra.mxu0 0.0
    %756 = vmatprep.mubr.f32.mxu0 0.0
    %757 = vmatmul.mubr.f32.gmra.mrb[0].mxu0 %v690
    %v758 = vpop.f32.mrb[0].mxu0
    %v759 = vadd.f32 0.0, %v758
    %v760 = vpop.f32.mrb[0].mxu0
    %761 = vdwg.mxu0
    %v763 = vrot.slane %v759, 6
    %v765 = vadd.f32 %v686, %v763
    %v766 = vxor.u32 %v685, 2147483648
    %v767 = vmul.f32 %v766, 1.442695
    %v768 = vpow.pop %v767
    %v769 = vadd.f32 %v768, 1.0
    %v770 = vrcp.pop %v769
    %v771 = vmul.f32 1.0, %v770
    %v772 = vtanh.pop %v685
    %v774 = vrot.slane %v560, 6
    %v776 = vmul.f32 %v771, %v774
    %778 = vrot.lane.b32.xlu0 %v772, 64
    %v779 = vpop.permute.xlu0 %778
    %v781 = vmul.f32 %v771, %v779
    %783 = vrot.lane.b32.xlu0 %v781, 32
    %v784 = vpop.permute.xlu0 %783
    %v786 = vadd.f32 %v776, %v784
    %v787 = vtanh.pop %v786
    %789 = vrot.lane.b32.xlu0 %v787, 64
    %v790 = vpop.permute.xlu0 %789
    %v792 = vmul.f32 %v771, %v790
    %v793 = vxor.u32 %v765, 2147483648
    %v794 = vmul.f32 %v793, 1.442695
    %v795 = vpow.pop %v794
    %v796 = vadd.f32 %v795, 1.0
    %v797 = vrcp.pop %v796
    %v798 = vmul.f32 1.0, %v797
    %v799 = vtanh.pop %v765
    %v801 = vrot.slane %v587, 2
    %v803 = vmul.f32 %v798, %v801
    %805 = vrot.lane.b32.xlu0 %v799, 64
    %v806 = vpop.permute.xlu0 %805
    %v808 = vmul.f32 %v798, %v806
    %810 = vrot.lane.b32.xlu0 %v808, 32
    %v811 = vpop.permute.xlu0 %810
    %v813 = vadd.f32 %v803, %v811
    %v814 = vtanh.pop %v813
    %816 = vrot.lane.b32.xlu0 %v814, 64
    %v817 = vpop.permute.xlu0 %816
    %v819 = vmul.f32 %v798, %v817
    %821 = vrot.lane.b32.xlu0 %v792, 32
    %v822 = vpop.permute.xlu0 %821
    %824 = vst.msk [vmem:[#allocation3] sm:$0x30] %vm604, %v822
    %826 = vrot.lane.b32.xlu0 %v819, 32
    %v827 = vpop.permute.xlu0 %826
    %829 = vst.msk [vmem:[#allocation4 + $0x8] sm:$0xc] %vm598, %v827
    %v830 = vld [vmem:[#allocation2] sm:$0xc0]
    %v831 = vrot.slane %v792, 4
    %832 = vrot.lane.b32.xlu0 %v831, 32
    %v833 = vpop.permute.xlu0 %832
    %v834 = vsel %vm77, %v833, 0
    %836 = vmatprep.subr.mxu0 0.0
    %837 = vmatpush1.msra.mxu0 %v165
    %838 = vmatprep.subr.mxu0 0.0
    %839 = vmatpush1.msra.mxu0 %v166
    %840 = vmatprep.subr.mxu0 0.0
    %841 = vmatpush1.msra.mxu0 %v167
    %842 = vmatprep.subr.mxu0 0.0
    %843 = vmatpush1.msra.mxu0 %v168
    %844 = vmatprep.subr.mxu0 0.0
    %845 = vmatpush1.msra.mxu0 0.0
    %846 = vmatprep.subr.mxu0 0.0
    %847 = vmatpush1.msra.mxu0 0.0
    %848 = vmatprep.subr.mxu0 0.0
    %849 = vmatpush1.msra.mxu0 0.0
    %850 = vmatprep.subr.mxu0 0.0
    %851 = vmatpush1.msra.mxu0 0.0
    %852 = vmatprep.subr.mxu0 0.0
    %853 = vmatpush1.msra.mxu0 0.0
    %854 = vmatprep.subr.mxu0 0.0
    %855 = vmatpush1.msra.mxu0 0.0
    %856 = vmatprep.subr.mxu0 0.0
    %857 = vmatpush1.msra.mxu0 0.0
    %858 = vmatprep.subr.mxu0 0.0
    %859 = vmatpush1.msra.mxu0 0.0
    %860 = vmatprep.subr.mxu0 0.0
    %861 = vmatpush1.msra.mxu0 0.0
    %862 = vmatprep.subr.mxu0 0.0
    %863 = vmatpush1.msra.mxu0 0.0
    %864 = vmatprep.subr.mxu0 0.0
    %865 = vmatpush1.msra.mxu0 0.0
    %866 = vmatprep.subr.mxu0 0.0
    %867 = vmatpush1.msra.mxu0 0.0
    %868 = vmatprep.subr.mxu0 0.0
    %869 = vmatpush1.msra.mxu0 0.0
    %870 = vmatprep.subr.mxu0 0.0
    %871 = vmatpush1.msra.mxu0 0.0
    %872 = vmatprep.subr.mxu0 0.0
    %873 = vmatpush1.msra.mxu0 0.0
    %874 = vmatprep.subr.mxu0 0.0
    %875 = vmatpush1.msra.mxu0 0.0
    %876 = vmatprep.subr.mxu0 0.0
    %877 = vmatpush1.msra.mxu0 0.0
    %878 = vmatprep.subr.mxu0 0.0
    %879 = vmatpush1.msra.mxu0 0.0
    %880 = vmatprep.subr.mxu0 0.0
    %881 = vmatpush1.msra.mxu0 0.0
    %882 = vmatprep.subr.mxu0 0.0
    %883 = vmatpush1.msra.mxu0 0.0
    %884 = vmatprep.subr.mxu0 0.0
    %885 = vmatpush1.msra.mxu0 0.0
    %886 = vmatprep.subr.mxu0 0.0
    %887 = vmatpush1.msra.mxu0 0.0
    %888 = vmatprep.subr.mxu0 0.0
    %889 = vmatpush1.msra.mxu0 0.0
    %890 = vmatprep.subr.mxu0 0.0
    %891 = vmatpush1.msra.mxu0 0.0
    %892 = vmatprep.subr.mxu0 0.0
    %893 = vmatpush1.msra.mxu0 0.0
    %894 = vmatprep.subr.mxu0 0.0
    %895 = vmatpush1.msra.mxu0 0.0
    %896 = vmatprep.subr.mxu0 0.0
    %897 = vmatpush1.msra.mxu0 0.0
    %898 = vmatprep.subr.mxu0 0.0
    %899 = vmatpush1.msra.mxu0 0.0
    %900 = vmatprep.mubr.f32.mxu0 0.0
    %901 = vmatmul.mubr.f32.gmra.mrb[0].mxu0 %v834
    %v902 = vpop.f32.mrb[0].mxu0
    %v903 = vadd.f32 0.0, %v902
    %v904 = vpop.f32.mrb[0].mxu0
    %905 = vdwg.mxu0
    %v907 = vrot.slane %v903, 2
    %v909 = vadd.f32 %v830, %v907
    %v910 = vld [vmem:[#allocation2 + $0x18] sm:$0x3]
    %v911 = vrot.slane %v819, 2
    %912 = vrot.lane.b32.xlu0 %v911, 32
    %v913 = vpop.permute.xlu0 %912
    %v914 = vsel %vm77, %v913, 0
    %916 = vmatprep.subr.mxu0 0.0
    %917 = vmatpush1.msra.mxu0 %v169
    %918 = vmatprep.subr.mxu0 0.0
    %919 = vmatpush1.msra.mxu0 %v170
    %920 = vmatprep.subr.mxu0 0.0
    %921 = vmatpush1.msra.mxu0 %v171
    %922 = vmatprep.subr.mxu0 0.0
    %923 = vmatpush1.msra.mxu0 %v172
    %924 = vmatprep.subr.mxu0 0.0
    %925 = vmatpush1.msra.mxu0 0.0
    %926 = vmatprep.subr.mxu0 0.0
    %927 = vmatpush1.msra.mxu0 0.0
    %928 = vmatprep.subr.mxu0 0.0
    %929 = vmatpush1.msra.mxu0 0.0
    %930 = vmatprep.subr.mxu0 0.0
    %931 = vmatpush1.msra.mxu0 0.0
    %932 = vmatprep.subr.mxu0 0.0
    %933 = vmatpush1.msra.mxu0 0.0
    %934 = vmatprep.subr.mxu0 0.0
    %935 = vmatpush1.msra.mxu0 0.0
    %936 = vmatprep.subr.mxu0 0.0
    %937 = vmatpush1.msra.mxu0 0.0
    %938 = vmatprep.subr.mxu0 0.0
    %939 = vmatpush1.msra.mxu0 0.0
    %940 = vmatprep.subr.mxu0 0.0
    %941 = vmatpush1.msra.mxu0 0.0
    %942 = vmatprep.subr.mxu0 0.0
    %943 = vmatpush1.msra.mxu0 0.0
    %944 = vmatprep.subr.mxu0 0.0
    %945 = vmatpush1.msra.mxu0 0.0
    %946 = vmatprep.subr.mxu0 0.0
    %947 = vmatpush1.msra.mxu0 0.0
    %948 = vmatprep.subr.mxu0 0.0
    %949 = vmatpush1.msra.mxu0 0.0
    %950 = vmatprep.subr.mxu0 0.0
    %951 = vmatpush1.msra.mxu0 0.0
    %952 = vmatprep.subr.mxu0 0.0
    %953 = vmatpush1.msra.mxu0 0.0
    %954 = vmatprep.subr.mxu0 0.0
    %955 = vmatpush1.msra.mxu0 0.0
    %956 = vmatprep.subr.mxu0 0.0
    %957 = vmatpush1.msra.mxu0 0.0
    %958 = vmatprep.subr.mxu0 0.0
    %959 = vmatpush1.msra.mxu0 0.0
    %960 = vmatprep.subr.mxu0 0.0
    %961 = vmatpush1.msra.mxu0 0.0
    %962 = vmatprep.subr.mxu0 0.0
    %963 = vmatpush1.msra.mxu0 0.0
    %964 = vmatprep.subr.mxu0 0.0
    %965 = vmatpush1.msra.mxu0 0.0
    %966 = vmatprep.subr.mxu0 0.0
    %967 = vmatpush1.msra.mxu0 0.0
    %968 = vmatprep.subr.mxu0 0.0
    %969 = vmatpush1.msra.mxu0 0.0
    %970 = vmatprep.subr.mxu0 0.0
    %971 = vmatpush1.msra.mxu0 0.0
    %972 = vmatprep.subr.mxu0 0.0
    %973 = vmatpush1.msra.mxu0 0.0
    %974 = vmatprep.subr.mxu0 0.0
    %975 = vmatpush1.msra.mxu0 0.0
    %976 = vmatprep.subr.mxu0 0.0
    %977 = vmatpush1.msra.mxu0 0.0
    %978 = vmatprep.subr.mxu0 0.0
    %979 = vmatpush1.msra.mxu0 0.0
    %980 = vmatprep.mubr.f32.mxu0 0.0
    %981 = vmatmul.mubr.f32.gmra.mrb[0].mxu0 %v914
    %v982 = vpop.f32.mrb[0].mxu0
    %v983 = vadd.f32 0.0, %v982
    %v984 = vpop.f32.mrb[0].mxu0
    %985 = vdwg.mxu0
    %v986 = vadd.f32 %v910, %v983
    %v987 = vxor.u32 %v909, 2147483648
    %v988 = vmul.f32 %v987, 1.442695
    %v989 = vpow.pop %v988
    %v990 = vadd.f32 %v989, 1.0
    %v991 = vrcp.pop %v990
    %v992 = vmul.f32 1.0, %v991
    %v993 = vtanh.pop %v909
    %v995 = vrot.slane %v786, 6
    %v997 = vmul.f32 %v992, %v995
    %999 = vrot.lane.b32.xlu0 %v993, 64
    %v1000 = vpop.permute.xlu0 %999
    %v1002 = vmul.f32 %v992, %v1000
    %1004 = vrot.lane.b32.xlu0 %v1002, 32
    %v1005 = vpop.permute.xlu0 %1004
    %v1007 = vadd.f32 %v997, %v1005
    %v1008 = vtanh.pop %v1007
    %1010 = vrot.lane.b32.xlu0 %v1008, 64
    %v1011 = vpop.permute.xlu0 %1010
    %v1013 = vmul.f32 %v992, %v1011
    %v1014 = vxor.u32 %v986, 2147483648
    %v1015 = vmul.f32 %v1014, 1.442695
    %v1016 = vpow.pop %v1015
    %v1017 = vadd.f32 %v1016, 1.0
    %v1018 = vrcp.pop %v1017
    %v1019 = vmul.f32 1.0, %v1018
    %v1020 = vtanh.pop %v986
    %v1022 = vrot.slane %v813, 2
    %v1024 = vmul.f32 %v1019, %v1022
    %1026 = vrot.lane.b32.xlu0 %v1020, 64
    %v1027 = vpop.permute.xlu0 %1026
    %v1029 = vmul.f32 %v1019, %v1027
    %1031 = vrot.lane.b32.xlu0 %v1029, 32
    %v1032 = vpop.permute.xlu0 %1031
    %v1034 = vadd.f32 %v1024, %v1032
    %v1035 = vtanh.pop %v1034
    %1037 = vrot.lane.b32.xlu0 %v1035, 64
    %v1038 = vpop.permute.xlu0 %1037
    %v1040 = vmul.f32 %v1019, %v1038
    %1042 = vrot.lane.b32.xlu0 %v1013, 32
    %v1043 = vpop.permute.xlu0 %1042
    %1045 = vst.msk [vmem:[#allocation3] sm:$0xc0] %vm381, %v1043
    %1047 = vrot.lane.b32.xlu0 %v1040, 32
    %v1048 = vpop.permute.xlu0 %1047
    %1050 = vst.msk [vmem:[#allocation4 + $0x8] sm:$0x3] %vm375, %v1048
    %v1051 = vld [vmem:[#allocation2 + $0x10] sm:$0x3]
    %v1052 = vrot.slane %v1013, 6
    %1053 = vrot.lane.b32.xlu0 %v1052, 32
    %v1054 = vpop.permute.xlu0 %1053
    %v1055 = vsel %vm77, %v1054, 0
    %1057 = vmatprep.subr.mxu0 0.0
    %1058 = vmatpush1.msra.mxu0 %v165
    %1059 = vmatprep.subr.mxu0 0.0
    %1060 = vmatpush1.msra.mxu0 %v166
    %1061 = vmatprep.subr.mxu0 0.0
    %1062 = vmatpush1.msra.mxu0 %v167
    %1063 = vmatprep.subr.mxu0 0.0
    %1064 = vmatpush1.msra.mxu0 %v168
    %1065 = vmatprep.subr.mxu0 0.0
    %1066 = vmatpush1.msra.mxu0 0.0
    %1067 = vmatprep.subr.mxu0 0.0
    %1068 = vmatpush1.msra.mxu0 0.0
    %1069 = vmatprep.subr.mxu0 0.0
    %1070 = vmatpush1.msra.mxu0 0.0
    %1071 = vmatprep.subr.mxu0 0.0
    %1072 = vmatpush1.msra.mxu0 0.0
    %1073 = vmatprep.subr.mxu0 0.0
    %1074 = vmatpush1.msra.mxu0 0.0
    %1075 = vmatprep.subr.mxu0 0.0
    %1076 = vmatpush1.msra.mxu0 0.0
    %1077 = vmatprep.subr.mxu0 0.0
    %1078 = vmatpush1.msra.mxu0 0.0
    %1079 = vmatprep.subr.mxu0 0.0
    %1080 = vmatpush1.msra.mxu0 0.0
    %1081 = vmatprep.subr.mxu0 0.0
    %1082 = vmatpush1.msra.mxu0 0.0
    %1083 = vmatprep.subr.mxu0 0.0
    %1084 = vmatpush1.msra.mxu0 0.0
    %1085 = vmatprep.subr.mxu0 0.0
    %1086 = vmatpush1.msra.mxu0 0.0
    %1087 = vmatprep.subr.mxu0 0.0
    %1088 = vmatpush1.msra.mxu0 0.0
    %1089 = vmatprep.subr.mxu0 0.0
    %1090 = vmatpush1.msra.mxu0 0.0
    %1091 = vmatprep.subr.mxu0 0.0
    %1092 = vmatpush1.msra.mxu0 0.0
    %1093 = vmatprep.subr.mxu0 0.0
    %1094 = vmatpush1.msra.mxu0 0.0
    %1095 = vmatprep.subr.mxu0 0.0
    %1096 = vmatpush1.msra.mxu0 0.0
    %1097 = vmatprep.subr.mxu0 0.0
    %1098 = vmatpush1.msra.mxu0 0.0
    %1099 = vmatprep.subr.mxu0 0.0
    %1100 = vmatpush1.msra.mxu0 0.0
    %1101 = vmatprep.subr.mxu0 0.0
    %1102 = vmatpush1.msra.mxu0 0.0
    %1103 = vmatprep.subr.mxu0 0.0
    %1104 = vmatpush1.msra.mxu0 0.0
    %1105 = vmatprep.subr.mxu0 0.0
    %1106 = vmatpush1.msra.mxu0 0.0
    %1107 = vmatprep.subr.mxu0 0.0
    %1108 = vmatpush1.msra.mxu0 0.0
    %1109 = vmatprep.subr.mxu0 0.0
    %1110 = vmatpush1.msra.mxu0 0.0
    %1111 = vmatprep.subr.mxu0 0.0
    %1112 = vmatpush1.msra.mxu0 0.0
    %1113 = vmatprep.subr.mxu0 0.0
    %1114 = vmatpush1.msra.mxu0 0.0
    %1115 = vmatprep.subr.mxu0 0.0
    %1116 = vmatpush1.msra.mxu0 0.0
    %1117 = vmatprep.subr.mxu0 0.0
    %1118 = vmatpush1.msra.mxu0 0.0
    %1119 = vmatprep.subr.mxu0 0.0
    %1120 = vmatpush1.msra.mxu0 0.0
    %1121 = vmatprep.mubr.f32.mxu0 0.0
    %1122 = vmatmul.mubr.f32.gmra.mrb[0].mxu0 %v1055
    %v1123 = vpop.f32.mrb[0].mxu0
    %v1124 = vadd.f32 0.0, %v1123
    %v1125 = vpop.f32.mrb[0].mxu0
    %1126 = vdwg.mxu0
    %v1127 = vadd.f32 %v1051, %v1124
    %v1128 = vld [vmem:[#allocation2 + $0x8] sm:$0xc0]
    %v1129 = vsel %vm77, %v1048, 0
    %1131 = vmatprep.subr.mxu0 0.0
    %1132 = vmatpush1.msra.mxu0 %v169
    %1133 = vmatprep.subr.mxu0 0.0
    %1134 = vmatpush1.msra.mxu0 %v170
    %1135 = vmatprep.subr.mxu0 0.0
    %1136 = vmatpush1.msra.mxu0 %v171
    %1137 = vmatprep.subr.mxu0 0.0
    %1138 = vmatpush1.msra.mxu0 %v172
    %1139 = vmatprep.subr.mxu0 0.0
    %1140 = vmatpush1.msra.mxu0 0.0
    %1141 = vmatprep.subr.mxu0 0.0
    %1142 = vmatpush1.msra.mxu0 0.0
    %1143 = vmatprep.subr.mxu0 0.0
    %1144 = vmatpush1.msra.mxu0 0.0
    %1145 = vmatprep.subr.mxu0 0.0
    %1146 = vmatpush1.msra.mxu0 0.0
    %1147 = vmatprep.subr.mxu0 0.0
    %1148 = vmatpush1.msra.mxu0 0.0
    %1149 = vmatprep.subr.mxu0 0.0
    %1150 = vmatpush1.msra.mxu0 0.0
    %1151 = vmatprep.subr.mxu0 0.0
    %1152 = vmatpush1.msra.mxu0 0.0
    %1153 = vmatprep.subr.mxu0 0.0
    %1154 = vmatpush1.msra.mxu0 0.0
    %1155 = vmatprep.subr.mxu0 0.0
    %1156 = vmatpush1.msra.mxu0 0.0
    %1157 = vmatprep.subr.mxu0 0.0
    %1158 = vmatpush1.msra.mxu0 0.0
    %1159 = vmatprep.subr.mxu0 0.0
    %1160 = vmatpush1.msra.mxu0 0.0
    %1161 = vmatprep.subr.mxu0 0.0
    %1162 = vmatpush1.msra.mxu0 0.0
    %1163 = vmatprep.subr.mxu0 0.0
    %1164 = vmatpush1.msra.mxu0 0.0
    %1165 = vmatprep.subr.mxu0 0.0
    %1166 = vmatpush1.msra.mxu0 0.0
    %1167 = vmatprep.subr.mxu0 0.0
    %1168 = vmatpush1.msra.mxu0 0.0
    %1169 = vmatprep.subr.mxu0 0.0
    %1170 = vmatpush1.msra.mxu0 0.0
    %1171 = vmatprep.subr.mxu0 0.0
    %1172 = vmatpush1.msra.mxu0 0.0
    %1173 = vmatprep.subr.mxu0 0.0
    %1174 = vmatpush1.msra.mxu0 0.0
    %1175 = vmatprep.subr.mxu0 0.0
    %1176 = vmatpush1.msra.mxu0 0.0
    %1177 = vmatprep.subr.mxu0 0.0
    %1178 = vmatpush1.msra.mxu0 0.0
    %1179 = vmatprep.subr.mxu0 0.0
    %1180 = vmatpush1.msra.mxu0 0.0
    %1181 = vmatprep.subr.mxu0 0.0
    %1182 = vmatpush1.msra.mxu0 0.0
    %1183 = vmatprep.subr.mxu0 0.0
    %1184 = vmatpush1.msra.mxu0 0.0
    %1185 = vmatprep.subr.mxu0 0.0
    %1186 = vmatpush1.msra.mxu0 0.0
    %1187 = vmatprep.subr.mxu0 0.0
    %1188 = vmatpush1.msra.mxu0 0.0
    %1189 = vmatprep.subr.mxu0 0.0
    %1190 = vmatpush1.msra.mxu0 0.0
    %1191 = vmatprep.subr.mxu0 0.0
    %1192 = vmatpush1.msra.mxu0 0.0
    %1193 = vmatprep.subr.mxu0 0.0
    %1194 = vmatpush1.msra.mxu0 0.0
    %1195 = vmatprep.mubr.f32.mxu0 0.0
    %1196 = vmatmul.mubr.f32.gmra.mrb[0].mxu0 %v1129
    %v1197 = vpop.f32.mrb[0].mxu0
    %v1198 = vadd.f32 0.0, %v1197
    %v1199 = vpop.f32.mrb[0].mxu0
    %1200 = vdwg.mxu0
    %v1202 = vrot.slane %v1198, 2
    %v1204 = vadd.f32 %v1128, %v1202
    %v1205 = vxor.u32 %v1127, 2147483648
    %v1206 = vmul.f32 %v1205, 1.442695
    %v1207 = vpow.pop %v1206
    %v1208 = vadd.f32 %v1207, 1.0
    %v1209 = vrcp.pop %v1208
    %v1210 = vmul.f32 1.0, %v1209
    %v1211 = vtanh.pop %v1127
    %v1213 = vrot.slane %v1007, 6
    %v1215 = vmul.f32 %v1210, %v1213
    %1217 = vrot.lane.b32.xlu0 %v1211, 64
    %v1218 = vpop.permute.xlu0 %1217
    %v1220 = vmul.f32 %v1210, %v1218
    %1222 = vrot.lane.b32.xlu0 %v1220, 32
    %v1223 = vpop.permute.xlu0 %1222
    %v1225 = vadd.f32 %v1215, %v1223
    %v1226 = vtanh.pop %v1225
    %1228 = vrot.lane.b32.xlu0 %v1226, 64
    %v1229 = vpop.permute.xlu0 %1228
    %v1231 = vmul.f32 %v1210, %v1229
    %v1232 = vxor.u32 %v1204, 2147483648
    %v1233 = vmul.f32 %v1232, 1.442695
    %v1234 = vpow.pop %v1233
    %v1235 = vadd.f32 %v1234, 1.0
    %v1236 = vrcp.pop %v1235
    %v1237 = vmul.f32 1.0, %v1236
    %v1238 = vtanh.pop %v1204
    %v1240 = vrot.slane %v1034, 2
    %v1242 = vmul.f32 %v1237, %v1240
    %1244 = vrot.lane.b32.xlu0 %v1238, 64
    %v1245 = vpop.permute.xlu0 %1244
    %v1247 = vmul.f32 %v1237, %v1245
    %1249 = vrot.lane.b32.xlu0 %v1247, 32
    %v1250 = vpop.permute.xlu0 %1249
    %v1252 = vadd.f32 %v1242, %v1250
    %v1253 = vtanh.pop %v1252
    %1255 = vrot.lane.b32.xlu0 %v1253, 64
    %v1256 = vpop.permute.xlu0 %1255
    %v1258 = vmul.f32 %v1237, %v1256
    %1260 = vrot.lane.b32.xlu0 %v1231, 32
    %v1261 = vpop.permute.xlu0 %1260
    %1263 = vst.msk [vmem:[#allocation3 + $0x8] sm:$0x3] %vm375, %v1261
    %1265 = vrot.lane.b32.xlu0 %v1258, 32
    %v1266 = vpop.permute.xlu0 %1265
    %1268 = vst.msk [vmem:[#allocation4] sm:$0xc0] %vm381, %v1266
    %v1269 = vld [vmem:[#allocation2 + $0x10] sm:$0xc]
    %v1270 = vsel %vm77, %v1261, 0
    %1272 = vmatprep.subr.mxu0 0.0
    %1273 = vmatpush1.msra.mxu0 %v165
    %1274 = vmatprep.subr.mxu0 0.0
    %1275 = vmatpush1.msra.mxu0 %v166
    %1276 = vmatprep.subr.mxu0 0.0
    %1277 = vmatpush1.msra.mxu0 %v167
    %1278 = vmatprep.subr.mxu0 0.0
    %1279 = vmatpush1.msra.mxu0 %v168
    %1280 = vmatprep.subr.mxu0 0.0
    %1281 = vmatpush1.msra.mxu0 0.0
    %1282 = vmatprep.subr.mxu0 0.0
    %1283 = vmatpush1.msra.mxu0 0.0
    %1284 = vmatprep.subr.mxu0 0.0
    %1285 = vmatpush1.msra.mxu0 0.0
    %1286 = vmatprep.subr.mxu0 0.0
    %1287 = vmatpush1.msra.mxu0 0.0
    %1288 = vmatprep.subr.mxu0 0.0
    %1289 = vmatpush1.msra.mxu0 0.0
    %1290 = vmatprep.subr.mxu0 0.0
    %1291 = vmatpush1.msra.mxu0 0.0
    %1292 = vmatprep.subr.mxu0 0.0
    %1293 = vmatpush1.msra.mxu0 0.0
    %1294 = vmatprep.subr.mxu0 0.0
    %1295 = vmatpush1.msra.mxu0 0.0
    %1296 = vmatprep.subr.mxu0 0.0
    %1297 = vmatpush1.msra.mxu0 0.0
    %1298 = vmatprep.subr.mxu0 0.0
    %1299 = vmatpush1.msra.mxu0 0.0
    %1300 = vmatprep.subr.mxu0 0.0
    %1301 = vmatpush1.msra.mxu0 0.0
    %1302 = vmatprep.subr.mxu0 0.0
    %1303 = vmatpush1.msra.mxu0 0.0
    %1304 = vmatprep.subr.mxu0 0.0
    %1305 = vmatpush1.msra.mxu0 0.0
    %1306 = vmatprep.subr.mxu0 0.0
    %1307 = vmatpush1.msra.mxu0 0.0
    %1308 = vmatprep.subr.mxu0 0.0
    %1309 = vmatpush1.msra.mxu0 0.0
    %1310 = vmatprep.subr.mxu0 0.0
    %1311 = vmatpush1.msra.mxu0 0.0
    %1312 = vmatprep.subr.mxu0 0.0
    %1313 = vmatpush1.msra.mxu0 0.0
    %1314 = vmatprep.subr.mxu0 0.0
    %1315 = vmatpush1.msra.mxu0 0.0
    %1316 = vmatprep.subr.mxu0 0.0
    %1317 = vmatpush1.msra.mxu0 0.0
    %1318 = vmatprep.subr.mxu0 0.0
    %1319 = vmatpush1.msra.mxu0 0.0
    %1320 = vmatprep.subr.mxu0 0.0
    %1321 = vmatpush1.msra.mxu0 0.0
    %1322 = vmatprep.subr.mxu0 0.0
    %1323 = vmatpush1.msra.mxu0 0.0
    %1324 = vmatprep.subr.mxu0 0.0
    %1325 = vmatpush1.msra.mxu0 0.0
    %1326 = vmatprep.subr.mxu0 0.0
    %1327 = vmatpush1.msra.mxu0 0.0
    %1328 = vmatprep.subr.mxu0 0.0
    %1329 = vmatpush1.msra.mxu0 0.0
    %1330 = vmatprep.subr.mxu0 0.0
    %1331 = vmatpush1.msra.mxu0 0.0
    %1332 = vmatprep.subr.mxu0 0.0
    %1333 = vmatpush1.msra.mxu0 0.0
    %1334 = vmatprep.subr.mxu0 0.0
    %1335 = vmatpush1.msra.mxu0 0.0
    %1336 = vmatprep.mubr.f32.mxu0 0.0
    %1337 = vmatmul.mubr.f32.gmra.mrb[0].mxu0 %v1270
    %v1338 = vpop.f32.mrb[0].mxu0
    %v1339 = vadd.f32 0.0, %v1338
    %v1340 = vpop.f32.mrb[0].mxu0
    %1341 = vdwg.mxu0
    %v1343 = vrot.slane %v1339, 6
    %v1345 = vadd.f32 %v1269, %v1343
    %v1346 = vld [vmem:[#allocation2 + $0x8] sm:$0x30]
    %v1347 = vrot.slane %v1258, 6
    %1348 = vrot.lane.b32.xlu0 %v1347, 32
    %v1349 = vpop.permute.xlu0 %1348
    %v1350 = vsel %vm77, %v1349, 0
    %1352 = vmatprep.subr.mxu0 0.0
    %1353 = vmatpush1.msra.mxu0 %v169
    %1354 = vmatprep.subr.mxu0 0.0
    %1355 = vmatpush1.msra.mxu0 %v170
    %1356 = vmatprep.subr.mxu0 0.0
    %1357 = vmatpush1.msra.mxu0 %v171
    %1358 = vmatprep.subr.mxu0 0.0
    %1359 = vmatpush1.msra.mxu0 %v172
    %1360 = vmatprep.subr.mxu0 0.0
    %1361 = vmatpush1.msra.mxu0 0.0
    %1362 = vmatprep.subr.mxu0 0.0
    %1363 = vmatpush1.msra.mxu0 0.0
    %1364 = vmatprep.subr.mxu0 0.0
    %1365 = vmatpush1.msra.mxu0 0.0
    %1366 = vmatprep.subr.mxu0 0.0
    %1367 = vmatpush1.msra.mxu0 0.0
    %1368 = vmatprep.subr.mxu0 0.0
    %1369 = vmatpush1.msra.mxu0 0.0
    %1370 = vmatprep.subr.mxu0 0.0
    %1371 = vmatpush1.msra.mxu0 0.0
    %1372 = vmatprep.subr.mxu0 0.0
    %1373 = vmatpush1.msra.mxu0 0.0
    %1374 = vmatprep.subr.mxu0 0.0
    %1375 = vmatpush1.msra.mxu0 0.0
    %1376 = vmatprep.subr.mxu0 0.0
    %1377 = vmatpush1.msra.mxu0 0.0
    %1378 = vmatprep.subr.mxu0 0.0
    %1379 = vmatpush1.msra.mxu0 0.0
    %1380 = vmatprep.subr.mxu0 0.0
    %1381 = vmatpush1.msra.mxu0 0.0
    %1382 = vmatprep.subr.mxu0 0.0
    %1383 = vmatpush1.msra.mxu0 0.0
    %1384 = vmatprep.subr.mxu0 0.0
    %1385 = vmatpush1.msra.mxu0 0.0
    %1386 = vmatprep.subr.mxu0 0.0
    %1387 = vmatpush1.msra.mxu0 0.0
    %1388 = vmatprep.subr.mxu0 0.0
    %1389 = vmatpush1.msra.mxu0 0.0
    %1390 = vmatprep.subr.mxu0 0.0
    %1391 = vmatpush1.msra.mxu0 0.0
    %1392 = vmatprep.subr.mxu0 0.0
    %1393 = vmatpush1.msra.mxu0 0.0
    %1394 = vmatprep.subr.mxu0 0.0
    %1395 = vmatpush1.msra.mxu0 0.0
    %1396 = vmatprep.subr.mxu0 0.0
    %1397 = vmatpush1.msra.mxu0 0.0
    %1398 = vmatprep.subr.mxu0 0.0
    %1399 = vmatpush1.msra.mxu0 0.0
    %1400 = vmatprep.subr.mxu0 0.0
    %1401 = vmatpush1.msra.mxu0 0.0
    %1402 = vmatprep.subr.mxu0 0.0
    %1403 = vmatpush1.msra.mxu0 0.0
    %1404 = vmatprep.subr.mxu0 0.0
    %1405 = vmatpush1.msra.mxu0 0.0
    %1406 = vmatprep.subr.mxu0 0.0
    %1407 = vmatpush1.msra.mxu0 0.0
    %1408 = vmatprep.subr.mxu0 0.0
    %1409 = vmatpush1.msra.mxu0 0.0
    %1410 = vmatprep.subr.mxu0 0.0
    %1411 = vmatpush1.msra.mxu0 0.0
    %1412 = vmatprep.subr.mxu0 0.0
    %1413 = vmatpush1.msra.mxu0 0.0
    %1414 = vmatprep.subr.mxu0 0.0
    %1415 = vmatpush1.msra.mxu0 0.0
    %1416 = vmatprep.mubr.f32.mxu0 0.0
    %1417 = vmatmul.mubr.f32.gmra.mrb[0].mxu0 %v1350
    %v1418 = vpop.f32.mrb[0].mxu0
    %v1419 = vadd.f32 0.0, %v1418
    %v1420 = vpop.f32.mrb[0].mxu0
    %1421 = vdwg.mxu0
    %v1423 = vrot.slane %v1419, 4
    %v1425 = vadd.f32 %v1346, %v1423
    %v1426 = vxor.u32 %v1345, 2147483648
    %v1427 = vmul.f32 %v1426, 1.442695
    %v1428 = vpow.pop %v1427
    %v1429 = vadd.f32 %v1428, 1.0
    %v1430 = vrcp.pop %v1429
    %v1431 = vmul.f32 1.0, %v1430
    %v1432 = vtanh.pop %v1345
    %v1434 = vrot.slane %v1225, 6
    %v1436 = vmul.f32 %v1431, %v1434
    %1438 = vrot.lane.b32.xlu0 %v1432, 64
    %v1439 = vpop.permute.xlu0 %1438
    %v1441 = vmul.f32 %v1431, %v1439
    %1443 = vrot.lane.b32.xlu0 %v1441, 32
    %v1444 = vpop.permute.xlu0 %1443
    %v1446 = vadd.f32 %v1436, %v1444
    %v1447 = vtanh.pop %v1446
    %1449 = vrot.lane.b32.xlu0 %v1447, 64
    %v1450 = vpop.permute.xlu0 %1449
    %v1452 = vmul.f32 %v1431, %v1450
    %v1453 = vxor.u32 %v1425, 2147483648
    %v1454 = vmul.f32 %v1453, 1.442695
    %v1455 = vpow.pop %v1454
    %v1456 = vadd.f32 %v1455, 1.0
    %v1457 = vrcp.pop %v1456
    %v1458 = vmul.f32 1.0, %v1457
    %v1459 = vtanh.pop %v1425
    %v1461 = vrot.slane %v1252, 2
    %v1463 = vmul.f32 %v1458, %v1461
    %1465 = vrot.lane.b32.xlu0 %v1459, 64
    %v1466 = vpop.permute.xlu0 %1465
    %v1468 = vmul.f32 %v1458, %v1466
    %1470 = vrot.lane.b32.xlu0 %v1468, 32
    %v1471 = vpop.permute.xlu0 %1470
    %v1473 = vadd.f32 %v1463, %v1471
    %v1474 = vtanh.pop %v1473
    %1476 = vrot.lane.b32.xlu0 %v1474, 64
    %v1477 = vpop.permute.xlu0 %1476
    %v1479 = vmul.f32 %v1458, %v1477
    %1481 = vrot.lane.b32.xlu0 %v1452, 32
    %v1482 = vpop.permute.xlu0 %1481
    %1484 = vst.msk [vmem:[#allocation3 + $0x8] sm:$0xc] %vm598, %v1482
    %1486 = vrot.lane.b32.xlu0 %v1479, 32
    %v1487 = vpop.permute.xlu0 %1486
    %1489 = vst.msk [vmem:[#allocation4] sm:$0x30] %vm604, %v1487
    %v1490 = vld [vmem:[#allocation2 + $0x10] sm:$0x30]
    %v1491 = vrot.slane %v1452, 2
    %1492 = vrot.lane.b32.xlu0 %v1491, 32
    %v1493 = vpop.permute.xlu0 %1492
    %v1494 = vsel %vm77, %v1493, 0
    %1496 = vmatprep.subr.mxu0 0.0
    %1497 = vmatpush1.msra.mxu0 %v165
    %1498 = vmatprep.subr.mxu0 0.0
    %1499 = vmatpush1.msra.mxu0 %v166
    %1500 = vmatprep.subr.mxu0 0.0
    %1501 = vmatpush1.msra.mxu0 %v167
    %1502 = vmatprep.subr.mxu0 0.0
    %1503 = vmatpush1.msra.mxu0 %v168
    %1504 = vmatprep.subr.mxu0 0.0
    %1505 = vmatpush1.msra.mxu0 0.0
    %1506 = vmatprep.subr.mxu0 0.0
    %1507 = vmatpush1.msra.mxu0 0.0
    %1508 = vmatprep.subr.mxu0 0.0
    %1509 = vmatpush1.msra.mxu0 0.0
    %1510 = vmatprep.subr.mxu0 0.0
    %1511 = vmatpush1.msra.mxu0 0.0
    %1512 = vmatprep.subr.mxu0 0.0
    %1513 = vmatpush1.msra.mxu0 0.0
    %1514 = vmatprep.subr.mxu0 0.0
    %1515 = vmatpush1.msra.mxu0 0.0
    %1516 = vmatprep.subr.mxu0 0.0
    %1517 = vmatpush1.msra.mxu0 0.0
    %1518 = vmatprep.subr.mxu0 0.0
    %1519 = vmatpush1.msra.mxu0 0.0
    %1520 = vmatprep.subr.mxu0 0.0
    %1521 = vmatpush1.msra.mxu0 0.0
    %1522 = vmatprep.subr.mxu0 0.0
    %1523 = vmatpush1.msra.mxu0 0.0
    %1524 = vmatprep.subr.mxu0 0.0
    %1525 = vmatpush1.msra.mxu0 0.0
    %1526 = vmatprep.subr.mxu0 0.0
    %1527 = vmatpush1.msra.mxu0 0.0
    %1528 = vmatprep.subr.mxu0 0.0
    %1529 = vmatpush1.msra.mxu0 0.0
    %1530 = vmatprep.subr.mxu0 0.0
    %1531 = vmatpush1.msra.mxu0 0.0
    %1532 = vmatprep.subr.mxu0 0.0
    %1533 = vmatpush1.msra.mxu0 0.0
    %1534 = vmatprep.subr.mxu0 0.0
    %1535 = vmatpush1.msra.mxu0 0.0
    %1536 = vmatprep.subr.mxu0 0.0
    %1537 = vmatpush1.msra.mxu0 0.0
    %1538 = vmatprep.subr.mxu0 0.0
    %1539 = vmatpush1.msra.mxu0 0.0
    %1540 = vmatprep.subr.mxu0 0.0
    %1541 = vmatpush1.msra.mxu0 0.0
    %1542 = vmatprep.subr.mxu0 0.0
    %1543 = vmatpush1.msra.mxu0 0.0
    %1544 = vmatprep.subr.mxu0 0.0
    %1545 = vmatpush1.msra.mxu0 0.0
    %1546 = vmatprep.subr.mxu0 0.0
    %1547 = vmatpush1.msra.mxu0 0.0
    %1548 = vmatprep.subr.mxu0 0.0
    %1549 = vmatpush1.msra.mxu0 0.0
    %1550 = vmatprep.subr.mxu0 0.0
    %1551 = vmatpush1.msra.mxu0 0.0
    %1552 = vmatprep.subr.mxu0 0.0
    %1553 = vmatpush1.msra.mxu0 0.0
    %1554 = vmatprep.subr.mxu0 0.0
    %1555 = vmatpush1.msra.mxu0 0.0
    %1556 = vmatprep.subr.mxu0 0.0
    %1557 = vmatpush1.msra.mxu0 0.0
    %1558 = vmatprep.subr.mxu0 0.0
    %1559 = vmatpush1.msra.mxu0 0.0
    %1560 = vmatprep.mubr.f32.mxu0 0.0
    %1561 = vmatmul.mubr.f32.gmra.mrb[0].mxu0 %v1494
    %v1562 = vpop.f32.mrb[0].mxu0
    %v1563 = vadd.f32 0.0, %v1562
    %v1564 = vpop.f32.mrb[0].mxu0
    %1565 = vdwg.mxu0
    %v1567 = vrot.slane %v1563, 4
    %v1569 = vadd.f32 %v1490, %v1567
    %v1570 = vld [vmem:[#allocation2 + $0x8] sm:$0xc]
    %v1571 = vrot.slane %v1479, 4
    %1572 = vrot.lane.b32.xlu0 %v1571, 32
    %v1573 = vpop.permute.xlu0 %1572
    %v1574 = vsel %vm77, %v1573, 0
    %1576 = vmatprep.subr.mxu0 0.0
    %1577 = vmatpush1.msra.mxu0 %v169
    %1578 = vmatprep.subr.mxu0 0.0
    %1579 = vmatpush1.msra.mxu0 %v170
    %1580 = vmatprep.subr.mxu0 0.0
    %1581 = vmatpush1.msra.mxu0 %v171
    %1582 = vmatprep.subr.mxu0 0.0
    %1583 = vmatpush1.msra.mxu0 %v172
    %1584 = vmatprep.subr.mxu0 0.0
    %1585 = vmatpush1.msra.mxu0 0.0
    %1586 = vmatprep.subr.mxu0 0.0
    %1587 = vmatpush1.msra.mxu0 0.0
    %1588 = vmatprep.subr.mxu0 0.0
    %1589 = vmatpush1.msra.mxu0 0.0
    %1590 = vmatprep.subr.mxu0 0.0
    %1591 = vmatpush1.msra.mxu0 0.0
    %1592 = vmatprep.subr.mxu0 0.0
    %1593 = vmatpush1.msra.mxu0 0.0
    %1594 = vmatprep.subr.mxu0 0.0
    %1595 = vmatpush1.msra.mxu0 0.0
    %1596 = vmatprep.subr.mxu0 0.0
    %1597 = vmatpush1.msra.mxu0 0.0
    %1598 = vmatprep.subr.mxu0 0.0
    %1599 = vmatpush1.msra.mxu0 0.0
    %1600 = vmatprep.subr.mxu0 0.0
    %1601 = vmatpush1.msra.mxu0 0.0
    %1602 = vmatprep.subr.mxu0 0.0
    %1603 = vmatpush1.msra.mxu0 0.0
    %1604 = vmatprep.subr.mxu0 0.0
    %1605 = vmatpush1.msra.mxu0 0.0
    %1606 = vmatprep.subr.mxu0 0.0
    %1607 = vmatpush1.msra.mxu0 0.0
    %1608 = vmatprep.subr.mxu0 0.0
    %1609 = vmatpush1.msra.mxu0 0.0
    %1610 = vmatprep.subr.mxu0 0.0
    %1611 = vmatpush1.msra.mxu0 0.0
    %1612 = vmatprep.subr.mxu0 0.0
    %1613 = vmatpush1.msra.mxu0 0.0
    %1614 = vmatprep.subr.mxu0 0.0
    %1615 = vmatpush1.msra.mxu0 0.0
    %1616 = vmatprep.subr.mxu0 0.0
    %1617 = vmatpush1.msra.mxu0 0.0
    %1618 = vmatprep.subr.mxu0 0.0
    %1619 = vmatpush1.msra.mxu0 0.0
    %1620 = vmatprep.subr.mxu0 0.0
    %1621 = vmatpush1.msra.mxu0 0.0
    %1622 = vmatprep.subr.mxu0 0.0
    %1623 = vmatpush1.msra.mxu0 0.0
    %1624 = vmatprep.subr.mxu0 0.0
    %1625 = vmatpush1.msra.mxu0 0.0
    %1626 = vmatprep.subr.mxu0 0.0
    %1627 = vmatpush1.msra.mxu0 0.0
    %1628 = vmatprep.subr.mxu0 0.0
    %1629 = vmatpush1.msra.mxu0 0.0
    %1630 = vmatprep.subr.mxu0 0.0
    %1631 = vmatpush1.msra.mxu0 0.0
    %1632 = vmatprep.subr.mxu0 0.0
    %1633 = vmatpush1.msra.mxu0 0.0
    %1634 = vmatprep.subr.mxu0 0.0
    %1635 = vmatpush1.msra.mxu0 0.0
    %1636 = vmatprep.subr.mxu0 0.0
    %1637 = vmatpush1.msra.mxu0 0.0
    %1638 = vmatprep.subr.mxu0 0.0
    %1639 = vmatpush1.msra.mxu0 0.0
    %1640 = vmatprep.mubr.f32.mxu0 0.0
    %1641 = vmatmul.mubr.f32.gmra.mrb[0].mxu0 %v1574
    %v1642 = vpop.f32.mrb[0].mxu0
    %v1643 = vadd.f32 0.0, %v1642
    %v1644 = vpop.f32.mrb[0].mxu0
    %1645 = vdwg.mxu0
    %v1647 = vrot.slane %v1643, 6
    %v1649 = vadd.f32 %v1570, %v1647
    %v1650 = vxor.u32 %v1569, 2147483648
    %v1651 = vmul.f32 %v1650, 1.442695
    %v1652 = vpow.pop %v1651
    %v1653 = vadd.f32 %v1652, 1.0
    %v1654 = vrcp.pop %v1653
    %v1655 = vmul.f32 1.0, %v1654
    %v1656 = vtanh.pop %v1569
    %v1658 = vrot.slane %v1446, 6
    %v1660 = vmul.f32 %v1655, %v1658
    %1662 = vrot.lane.b32.xlu0 %v1656, 64
    %v1663 = vpop.permute.xlu0 %1662
    %v1665 = vmul.f32 %v1655, %v1663
    %1667 = vrot.lane.b32.xlu0 %v1665, 32
    %v1668 = vpop.permute.xlu0 %1667
    %v1670 = vadd.f32 %v1660, %v1668
    %v1671 = vtanh.pop %v1670
    %1673 = vrot.lane.b32.xlu0 %v1671, 64
    %v1674 = vpop.permute.xlu0 %1673
    %v1676 = vmul.f32 %v1655, %v1674
    %v1677 = vxor.u32 %v1649, 2147483648
    %v1678 = vmul.f32 %v1677, 1.442695
    %v1679 = vpow.pop %v1678
    %v1680 = vadd.f32 %v1679, 1.0
    %v1681 = vrcp.pop %v1680
    %v1682 = vmul.f32 1.0, %v1681
    %v1683 = vtanh.pop %v1649
    %v1685 = vrot.slane %v1473, 2
    %v1687 = vmul.f32 %v1682, %v1685
    %1689 = vrot.lane.b32.xlu0 %v1683, 64
    %v1690 = vpop.permute.xlu0 %1689
    %v1692 = vmul.f32 %v1682, %v1690
    %1694 = vrot.lane.b32.xlu0 %v1692, 32
    %v1695 = vpop.permute.xlu0 %1694
    %v1697 = vadd.f32 %v1687, %v1695
    %v1698 = vtanh.pop %v1697
    %1700 = vrot.lane.b32.xlu0 %v1698, 64
    %v1701 = vpop.permute.xlu0 %1700
    %v1703 = vmul.f32 %v1682, %v1701
    %1705 = vrot.lane.b32.xlu0 %v1676, 32
    %v1706 = vpop.permute.xlu0 %1705
    %1708 = vst.msk [vmem:[#allocation3 + $0x8] sm:$0x30] %vm604, %v1706
    %1710 = vrot.lane.b32.xlu0 %v1703, 32
    %v1711 = vpop.permute.xlu0 %1710
    %1713 = vst.msk [vmem:[#allocation4] sm:$0xc] %vm598, %v1711
    %v1714 = vld [vmem:[#allocation2 + $0x10] sm:$0xc0]
    %v1715 = vrot.slane %v1676, 4
    %1716 = vrot.lane.b32.xlu0 %v1715, 32
    %v1717 = vpop.permute.xlu0 %1716
    %v1718 = vsel %vm77, %v1717, 0
    %1720 = vmatprep.subr.mxu0 0.0
    %1721 = vmatpush1.msra.mxu0 %v165
    %1722 = vmatprep.subr.mxu0 0.0
    %1723 = vmatpush1.msra.mxu0 %v166
    %1724 = vmatprep.subr.mxu0 0.0
    %1725 = vmatpush1.msra.mxu0 %v167
    %1726 = vmatprep.subr.mxu0 0.0
    %1727 = vmatpush1.msra.mxu0 %v168
    %1728 = vmatprep.subr.mxu0 0.0
    %1729 = vmatpush1.msra.mxu0 0.0
    %1730 = vmatprep.subr.mxu0 0.0
    %1731 = vmatpush1.msra.mxu0 0.0
    %1732 = vmatprep.subr.mxu0 0.0
    %1733 = vmatpush1.msra.mxu0 0.0
    %1734 = vmatprep.subr.mxu0 0.0
    %1735 = vmatpush1.msra.mxu0 0.0
    %1736 = vmatprep.subr.mxu0 0.0
    %1737 = vmatpush1.msra.mxu0 0.0
    %1738 = vmatprep.subr.mxu0 0.0
    %1739 = vmatpush1.msra.mxu0 0.0
    %1740 = vmatprep.subr.mxu0 0.0
    %1741 = vmatpush1.msra.mxu0 0.0
    %1742 = vmatprep.subr.mxu0 0.0
    %1743 = vmatpush1.msra.mxu0 0.0
    %1744 = vmatprep.subr.mxu0 0.0
    %1745 = vmatpush1.msra.mxu0 0.0
    %1746 = vmatprep.subr.mxu0 0.0
    %1747 = vmatpush1.msra.mxu0 0.0
    %1748 = vmatprep.subr.mxu0 0.0
    %1749 = vmatpush1.msra.mxu0 0.0
    %1750 = vmatprep.subr.mxu0 0.0
    %1751 = vmatpush1.msra.mxu0 0.0
    %1752 = vmatprep.subr.mxu0 0.0
    %1753 = vmatpush1.msra.mxu0 0.0
    %1754 = vmatprep.subr.mxu0 0.0
    %1755 = vmatpush1.msra.mxu0 0.0
    %1756 = vmatprep.subr.mxu0 0.0
    %1757 = vmatpush1.msra.mxu0 0.0
    %1758 = vmatprep.subr.mxu0 0.0
    %1759 = vmatpush1.msra.mxu0 0.0
    %1760 = vmatprep.subr.mxu0 0.0
    %1761 = vmatpush1.msra.mxu0 0.0
    %1762 = vmatprep.subr.mxu0 0.0
    %1763 = vmatpush1.msra.mxu0 0.0
    %1764 = vmatprep.subr.mxu0 0.0
    %1765 = vmatpush1.msra.mxu0 0.0
    %1766 = vmatprep.subr.mxu0 0.0
    %1767 = vmatpush1.msra.mxu0 0.0
    %1768 = vmatprep.subr.mxu0 0.0
    %1769 = vmatpush1.msra.mxu0 0.0
    %1770 = vmatprep.subr.mxu0 0.0
    %1771 = vmatpush1.msra.mxu0 0.0
    %1772 = vmatprep.subr.mxu0 0.0
    %1773 = vmatpush1.msra.mxu0 0.0
    %1774 = vmatprep.subr.mxu0 0.0
    %1775 = vmatpush1.msra.mxu0 0.0
    %1776 = vmatprep.subr.mxu0 0.0
    %1777 = vmatpush1.msra.mxu0 0.0
    %1778 = vmatprep.subr.mxu0 0.0
    %1779 = vmatpush1.msra.mxu0 0.0
    %1780 = vmatprep.subr.mxu0 0.0
    %1781 = vmatpush1.msra.mxu0 0.0
    %1782 = vmatprep.subr.mxu0 0.0
    %1783 = vmatpush1.msra.mxu0 0.0
    %1784 = vmatprep.mubr.f32.mxu0 0.0
    %1785 = vmatmul.mubr.f32.gmra.mrb[0].mxu0 %v1718
    %v1786 = vpop.f32.mrb[0].mxu0
    %v1787 = vadd.f32 0.0, %v1786
    %v1788 = vpop.f32.mrb[0].mxu0
    %1789 = vdwg.mxu0
    %v1791 = vrot.slane %v1787, 2
    %v1793 = vadd.f32 %v1714, %v1791
    %v1794 = vld [vmem:[#allocation2 + $0x8] sm:$0x3]
    %v1795 = vrot.slane %v1703, 2
    %1796 = vrot.lane.b32.xlu0 %v1795, 32
    %v1797 = vpop.permute.xlu0 %1796
    %v1798 = vsel %vm77, %v1797, 0
    %1800 = vmatprep.subr.mxu0 0.0
    %1801 = vmatpush1.msra.mxu0 %v169
    %1802 = vmatprep.subr.mxu0 0.0
    %1803 = vmatpush1.msra.mxu0 %v170
    %1804 = vmatprep.subr.mxu0 0.0
    %1805 = vmatpush1.msra.mxu0 %v171
    %1806 = vmatprep.subr.mxu0 0.0
    %1807 = vmatpush1.msra.mxu0 %v172
    %1808 = vmatprep.subr.mxu0 0.0
    %1809 = vmatpush1.msra.mxu0 0.0
    %1810 = vmatprep.subr.mxu0 0.0
    %1811 = vmatpush1.msra.mxu0 0.0
    %1812 = vmatprep.subr.mxu0 0.0
    %1813 = vmatpush1.msra.mxu0 0.0
    %1814 = vmatprep.subr.mxu0 0.0
    %1815 = vmatpush1.msra.mxu0 0.0
    %1816 = vmatprep.subr.mxu0 0.0
    %1817 = vmatpush1.msra.mxu0 0.0
    %1818 = vmatprep.subr.mxu0 0.0
    %1819 = vmatpush1.msra.mxu0 0.0
    %1820 = vmatprep.subr.mxu0 0.0
    %1821 = vmatpush1.msra.mxu0 0.0
    %1822 = vmatprep.subr.mxu0 0.0
    %1823 = vmatpush1.msra.mxu0 0.0
    %1824 = vmatprep.subr.mxu0 0.0
    %1825 = vmatpush1.msra.mxu0 0.0
    %1826 = vmatprep.subr.mxu0 0.0
    %1827 = vmatpush1.msra.mxu0 0.0
    %1828 = vmatprep.subr.mxu0 0.0
    %1829 = vmatpush1.msra.mxu0 0.0
    %1830 = vmatprep.subr.mxu0 0.0
    %1831 = vmatpush1.msra.mxu0 0.0
    %1832 = vmatprep.subr.mxu0 0.0
    %1833 = vmatpush1.msra.mxu0 0.0
    %1834 = vmatprep.subr.mxu0 0.0
    %1835 = vmatpush1.msra.mxu0 0.0
    %1836 = vmatprep.subr.mxu0 0.0
    %1837 = vmatpush1.msra.mxu0 0.0
    %1838 = vmatprep.subr.mxu0 0.0
    %1839 = vmatpush1.msra.mxu0 0.0
    %1840 = vmatprep.subr.mxu0 0.0
    %1841 = vmatpush1.msra.mxu0 0.0
    %1842 = vmatprep.subr.mxu0 0.0
    %1843 = vmatpush1.msra.mxu0 0.0
    %1844 = vmatprep.subr.mxu0 0.0
    %1845 = vmatpush1.msra.mxu0 0.0
    %1846 = vmatprep.subr.mxu0 0.0
    %1847 = vmatpush1.msra.mxu0 0.0
    %1848 = vmatprep.subr.mxu0 0.0
    %1849 = vmatpush1.msra.mxu0 0.0
    %1850 = vmatprep.subr.mxu0 0.0
    %1851 = vmatpush1.msra.mxu0 0.0
    %1852 = vmatprep.subr.mxu0 0.0
    %1853 = vmatpush1.msra.mxu0 0.0
    %1854 = vmatprep.subr.mxu0 0.0
    %1855 = vmatpush1.msra.mxu0 0.0
    %1856 = vmatprep.subr.mxu0 0.0
    %1857 = vmatpush1.msra.mxu0 0.0
    %1858 = vmatprep.subr.mxu0 0.0
    %1859 = vmatpush1.msra.mxu0 0.0
    %1860 = vmatprep.subr.mxu0 0.0
    %1861 = vmatpush1.msra.mxu0 0.0
    %1862 = vmatprep.subr.mxu0 0.0
    %1863 = vmatpush1.msra.mxu0 0.0
    %1864 = vmatprep.mubr.f32.mxu0 0.0
    %1865 = vmatmul.mubr.f32.gmra.mrb[0].mxu0 %v1798
    %v1866 = vpop.f32.mrb[0].mxu0
    %v1867 = vadd.f32 0.0, %v1866
    %v1868 = vpop.f32.mrb[0].mxu0
    %1869 = vdwg.mxu0
    %v1870 = vadd.f32 %v1794, %v1867
    %v1871 = vxor.u32 %v1793, 2147483648
    %v1872 = vmul.f32 %v1871, 1.442695
    %v1873 = vpow.pop %v1872
    %v1874 = vadd.f32 %v1873, 1.0
    %v1875 = vrcp.pop %v1874
    %v1876 = vmul.f32 1.0, %v1875
    %v1877 = vtanh.pop %v1793
    %v1879 = vrot.slane %v1670, 6
    %v1881 = vmul.f32 %v1876, %v1879
    %1883 = vrot.lane.b32.xlu0 %v1877, 64
    %v1884 = vpop.permute.xlu0 %1883
    %v1886 = vmul.f32 %v1876, %v1884
    %1888 = vrot.lane.b32.xlu0 %v1886, 32
    %v1889 = vpop.permute.xlu0 %1888
    %v1891 = vadd.f32 %v1881, %v1889
    %v1892 = vtanh.pop %v1891
    %1894 = vrot.lane.b32.xlu0 %v1892, 64
    %v1895 = vpop.permute.xlu0 %1894
    %v1897 = vmul.f32 %v1876, %v1895
    %v1898 = vxor.u32 %v1870, 2147483648
    %v1899 = vmul.f32 %v1898, 1.442695
    %v1900 = vpow.pop %v1899
    %v1901 = vadd.f32 %v1900, 1.0
    %v1902 = vrcp.pop %v1901
    %v1903 = vmul.f32 1.0, %v1902
    %v1904 = vtanh.pop %v1870
    %v1906 = vrot.slane %v1697, 2
    %v1908 = vmul.f32 %v1903, %v1906
    %1910 = vrot.lane.b32.xlu0 %v1904, 64
    %v1911 = vpop.permute.xlu0 %1910
    %v1913 = vmul.f32 %v1903, %v1911
    %1915 = vrot.lane.b32.xlu0 %v1913, 32
    %v1916 = vpop.permute.xlu0 %1915
    %v1918 = vadd.f32 %v1908, %v1916
    %v1919 = vtanh.pop %v1918
    %1921 = vrot.lane.b32.xlu0 %v1919, 64
    %v1922 = vpop.permute.xlu0 %1921
    %v1924 = vmul.f32 %v1903, %v1922
    %1926 = vrot.lane.b32.xlu0 %v1897, 32
    %v1927 = vpop.permute.xlu0 %1926
    %1929 = vst.msk [vmem:[#allocation3 + $0x8] sm:$0xc0] %vm381, %v1927
    %1931 = vrot.lane.b32.xlu0 %v1924, 32
    %v1932 = vpop.permute.xlu0 %1931
    %1934 = vst.msk [vmem:[#allocation4] sm:$0x3] %vm375, %v1932
    %v1935 = vld [vmem:[#allocation3] sm:$0xff]
    %v1936 = vld [vmem:[#allocation3 + $0x8] sm:$0xff]
    %v1937 = vld [vmem:[%s5] sm:$0xff]
    %v1938 = vld [vmem:[%s5 + $0x8] sm:$0xff]
    %v1939 = vld [vmem:[%s5 + $0x10] sm:$0xff]
    %v1940 = vld [vmem:[%s5 + $0x18] sm:$0xff]
    %v1941 = vld [vmem:[#allocation4] sm:$0xff]
    %v1942 = vld [vmem:[#allocation4 + $0x8] sm:$0xff]
    %v1943 = vld [vmem:[%s5 + $0x20] sm:$0xff]
    %v1944 = vld [vmem:[%s5 + $0x28] sm:$0xff]
    %v1945 = vld [vmem:[%s5 + $0x30] sm:$0xff]
    %v1946 = vld [vmem:[%s5 + $0x38] sm:$0xff]
    %v1948 = vsel %vm77, %v1941, 0
    %v1951 = vsel %vm77, %v1942, 0
    %1953 = vmatprep.subr.mxu0 0.0
    %1954 = vmatpush1.msra.mxu0 %v1943
    %1955 = vmatprep.subr.mxu0 0.0
    %1956 = vmatpush1.msra.mxu0 %v1944
    %1957 = vmatprep.subr.mxu0 0.0
    %1958 = vmatpush1.msra.mxu0 %v1945
    %1959 = vmatprep.subr.mxu0 0.0
    %1960 = vmatpush1.msra.mxu0 %v1946
    %1961 = vmatprep.subr.mxu0 0.0
    %1962 = vmatpush1.msra.mxu0 0.0
    %1963 = vmatprep.subr.mxu0 0.0
    %1964 = vmatpush1.msra.mxu0 0.0
    %1965 = vmatprep.subr.mxu0 0.0
    %1966 = vmatpush1.msra.mxu0 0.0
    %1967 = vmatprep.subr.mxu0 0.0
    %1968 = vmatpush1.msra.mxu0 0.0
    %1969 = vmatprep.subr.mxu0 0.0
    %1970 = vmatpush1.msra.mxu0 0.0
    %1971 = vmatprep.subr.mxu0 0.0
    %1972 = vmatpush1.msra.mxu0 0.0
    %1973 = vmatprep.subr.mxu0 0.0
    %1974 = vmatpush1.msra.mxu0 0.0
    %1975 = vmatprep.subr.mxu0 0.0
    %1976 = vmatpush1.msra.mxu0 0.0
    %1977 = vmatprep.subr.mxu0 0.0
    %1978 = vmatpush1.msra.mxu0 0.0
    %1979 = vmatprep.subr.mxu0 0.0
    %1980 = vmatpush1.msra.mxu0 0.0
    %1981 = vmatprep.subr.mxu0 0.0
    %1982 = vmatpush1.msra.mxu0 0.0
    %1983 = vmatprep.subr.mxu0 0.0
    %1984 = vmatpush1.msra.mxu0 0.0
    %1985 = vmatprep.subr.mxu0 0.0
    %1986 = vmatpush1.msra.mxu0 0.0
    %1987 = vmatprep.subr.mxu0 0.0
    %1988 = vmatpush1.msra.mxu0 0.0
    %1989 = vmatprep.subr.mxu0 0.0
    %1990 = vmatpush1.msra.mxu0 0.0
    %1991 = vmatprep.subr.mxu0 0.0
    %1992 = vmatpush1.msra.mxu0 0.0
    %1993 = vmatprep.subr.mxu0 0.0
    %1994 = vmatpush1.msra.mxu0 0.0
    %1995 = vmatprep.subr.mxu0 0.0
    %1996 = vmatpush1.msra.mxu0 0.0
    %1997 = vmatprep.subr.mxu0 0.0
    %1998 = vmatpush1.msra.mxu0 0.0
    %1999 = vmatprep.subr.mxu0 0.0
    %2000 = vmatpush1.msra.mxu0 0.0
    %2001 = vmatprep.subr.mxu0 0.0
    %2002 = vmatpush1.msra.mxu0 0.0
    %2003 = vmatprep.subr.mxu0 0.0
    %2004 = vmatpush1.msra.mxu0 0.0
    %2005 = vmatprep.subr.mxu0 0.0
    %2006 = vmatpush1.msra.mxu0 0.0
    %2007 = vmatprep.subr.mxu0 0.0
    %2008 = vmatpush1.msra.mxu0 0.0
    %2009 = vmatprep.subr.mxu0 0.0
    %2010 = vmatpush1.msra.mxu0 0.0
    %2011 = vmatprep.subr.mxu0 0.0
    %2012 = vmatpush1.msra.mxu0 0.0
    %2013 = vmatprep.subr.mxu0 0.0
    %2014 = vmatpush1.msra.mxu0 0.0
    %2015 = vmatprep.subr.mxu0 0.0
    %2016 = vmatpush1.msra.mxu0 0.0
    %2017 = vmatprep.mubr.f32.mxu0 0.0
    %2018 = vmatmul.mubr.f32.gmra.mrb[0].mxu0 %v1948
    %v2019 = vpop.f32.mrb[0].mxu0
    %v2020 = vadd.f32 0.0, %v2019
    %v2021 = vpop.f32.mrb[0].mxu0
    %2022 = vmatprep.mubr.f32.mxu0 0.0
    %2023 = vmatmul.mubr.f32.gmra.mrb[0].mxu0 %v1951
    %v2024 = vpop.f32.mrb[0].mxu0
    %v2025 = vadd.f32 0.0, %v2024
    %v2026 = vpop.f32.mrb[0].mxu0
    %2027 = vdwg.mxu0
    %v2029 = vsel %vm77, %v1935, 0
    %v2032 = vsel %vm77, %v1936, 0
    %2034 = vmatprep.subr.mxu0 0.0
    %2035 = vmatpush1.msra.mxu0 %v1937
    %2036 = vmatprep.subr.mxu0 0.0
    %2037 = vmatpush1.msra.mxu0 %v1938
    %2038 = vmatprep.subr.mxu0 0.0
    %2039 = vmatpush1.msra.mxu0 %v1939
    %2040 = vmatprep.subr.mxu0 0.0
    %2041 = vmatpush1.msra.mxu0 %v1940
    %2042 = vmatprep.subr.mxu0 0.0
    %2043 = vmatpush1.msra.mxu0 0.0
    %2044 = vmatprep.subr.mxu0 0.0
    %2045 = vmatpush1.msra.mxu0 0.0
    %2046 = vmatprep.subr.mxu0 0.0
    %2047 = vmatpush1.msra.mxu0 0.0
    %2048 = vmatprep.subr.mxu0 0.0
    %2049 = vmatpush1.msra.mxu0 0.0
    %2050 = vmatprep.subr.mxu0 0.0
    %2051 = vmatpush1.msra.mxu0 0.0
    %2052 = vmatprep.subr.mxu0 0.0
    %2053 = vmatpush1.msra.mxu0 0.0
    %2054 = vmatprep.subr.mxu0 0.0
    %2055 = vmatpush1.msra.mxu0 0.0
    %2056 = vmatprep.subr.mxu0 0.0
    %2057 = vmatpush1.msra.mxu0 0.0
    %2058 = vmatprep.subr.mxu0 0.0
    %2059 = vmatpush1.msra.mxu0 0.0
    %2060 = vmatprep.subr.mxu0 0.0
    %2061 = vmatpush1.msra.mxu0 0.0
    %2062 = vmatprep.subr.mxu0 0.0
    %2063 = vmatpush1.msra.mxu0 0.0
    %2064 = vmatprep.subr.mxu0 0.0
    %2065 = vmatpush1.msra.mxu0 0.0
    %2066 = vmatprep.subr.mxu0 0.0
    %2067 = vmatpush1.msra.mxu0 0.0
    %2068 = vmatprep.subr.mxu0 0.0
    %2069 = vmatpush1.msra.mxu0 0.0
    %2070 = vmatprep.subr.mxu0 0.0
    %2071 = vmatpush1.msra.mxu0 0.0
    %2072 = vmatprep.subr.mxu0 0.0
    %2073 = vmatpush1.msra.mxu0 0.0
    %2074 = vmatprep.subr.mxu0 0.0
    %2075 = vmatpush1.msra.mxu0 0.0
    %2076 = vmatprep.subr.mxu0 0.0
    %2077 = vmatpush1.msra.mxu0 0.0
    %2078 = vmatprep.subr.mxu0 0.0
    %2079 = vmatpush1.msra.mxu0 0.0
    %2080 = vmatprep.subr.mxu0 0.0
    %2081 = vmatpush1.msra.mxu0 0.0
    %2082 = vmatprep.subr.mxu0 0.0
    %2083 = vmatpush1.msra.mxu0 0.0
    %2084 = vmatprep.subr.mxu0 0.0
    %2085 = vmatpush1.msra.mxu0 0.0
    %2086 = vmatprep.subr.mxu0 0.0
    %2087 = vmatpush1.msra.mxu0 0.0
    %2088 = vmatprep.subr.mxu0 0.0
    %2089 = vmatpush1.msra.mxu0 0.0
    %2090 = vmatprep.subr.mxu0 0.0
    %2091 = vmatpush1.msra.mxu0 0.0
    %2092 = vmatprep.subr.mxu0 0.0
    %2093 = vmatpush1.msra.mxu0 0.0
    %2094 = vmatprep.subr.mxu0 0.0
    %2095 = vmatpush1.msra.mxu0 0.0
    %2096 = vmatprep.subr.mxu0 0.0
    %2097 = vmatpush1.msra.mxu0 0.0
    %2098 = vmatprep.mubr.f32.mxu0 0.0
    %2099 = vmatmul.mubr.f32.gmra.mrb[0].mxu0 %v2029
    %v2100 = vpop.f32.mrb[0].mxu0
    %v2101 = vadd.f32 %v2020, %v2100
    %v2102 = vpop.f32.mrb[0].mxu0
    %2103 = vmatprep.mubr.f32.mxu0 0.0
    %2104 = vmatmul.mubr.f32.gmra.mrb[0].mxu0 %v2032
    %v2105 = vpop.f32.mrb[0].mxu0
    %v2106 = vadd.f32 %v2025, %v2105
    %v2107 = vpop.f32.mrb[0].mxu0
    %2108 = vdwg.mxu0
    %v2109 = vld [vmem:[%s6] sm:$0x1]
    %v2111 = vlaneseq
    %v2112 = vshrl.u32 %v2111, 7
    %v2113 = vsub.s32 0, %v2112
    %v2114 = vrot.slane %v2109, %v2113
    %v2116 = vadd.f32 %v2101, %v2114
    %v2117 = vadd.f32 %v2106, %v2114
    %vm2118 = vcmask 130048
    %2119 = vst.msk [vmem:[#allocation10] sm:$0xff] %vm2118, %v2116
    %2120 = vst.msk [vmem:[#allocation10 + $0x8] sm:$0xff] %vm2118, %v2117
    // Predicated region
    $region38: #{tpu_custom_call.1} parent=1 // pred_check
      _
    $region39: #{tpu_custom_call.1} parent=1 // pred_check_branch
      %2122 = sbr.rel (0) target = $region41
    $region40: #{tpu_custom_call.1} parent=1 // pred_region
      %s2124 = ssub.s32 256, 256
      %2125 = vsyncadd [#allocation7], %s2124
      %s2126 = sshll.u32 [#allocation10], 4
      %s2127 = int_to_ptr.vmem [resolvable:$true] %s2126
      %2132 = dma.vmem_to_hbm [thread:$0]  %s2127, 256, %s7, [#allocation7], 128, 128, 8
    $region41: #{tpu_custom_call.1} parent=1 // pred_fallthru
      _
    // Predicated region
    $region42: #{tpu_custom_call.1} parent=1 // pred_check
      _
    $region43: #{tpu_custom_call.1} parent=1 // pred_check_branch
      %2134 = sbr.rel (0) target = $region45
    $region44: #{tpu_custom_call.1} parent=1 // pred_region
      %2135 = dma.done [#allocation7], 256
    $region45: #{tpu_custom_call.1} parent=1 // pred_fallthru
      _
    %2136 = vsyncpa [#allocation6], 1
    %2137 = vsyncpa [#allocation9], 1
    %2138 = vsyncpa [#allocation7], 1

</llo_original>
